<compile_context>
chip_gen: v5e
topology: v5e:2x2
jax: 0.10.0
libtpu: 0.0.40
codegen_flags: <defaults>
</compile_context>

<pallas_src>
import jax
import jax.numpy as jnp
from jax.experimental import pallas as pl
from jax.experimental.pallas import tpu as pltpu

LANE = 128
SUBLANE = 8


def _round_up(x, m):
    return ((x + m - 1) // m) * m


# ---------------------------------------------------------------------------
# Fused kernel
# ---------------------------------------------------------------------------
def _make_fused_kernel(*, num_layers, K, L, TB, C, P, has_conv3, compute_dtype):
    """Whole TCN: all residual blocks + final projection, one launch."""
    M = TB * L
    KC = K * C

    def kernel(*refs):
        it = iter(refs)
        x_ref = next(it)
        layers = [(next(it), next(it), next(it), next(it))       # w1, b1, w2, b2
                  for _ in range(num_layers)]
        wp_ref, bp_ref = next(it), next(it)
        out_ref = next(it)
        x_act, h_act, col_ref = next(it), next(it), next(it)

        # Causal zero-pad rows.  Re-zeroed every grid step (cheap: TB*P*C
        # compute_dtype stores) rather than gated on program_id(0)==0, because
        # scratch is per-TensorCore under dimension_semantics=("parallel",)
        # and the second core would otherwise see uninitialised pad rows.
        zpad = jnp.zeros((TB, P, C), compute_dtype)
        x_act[:, :P, :] = zpad
        h_act[:, :P, :] = zpad
        x_act[:, P:, :] = x_ref[...]

        def im2col(src_ref, d):
            # One lane-aligned shifted-window copy per tap; the K windows sit
            # side by side so the conv is ONE (M, K*C) @ (K*C, N) matmul.
            for k in range(K):
                off = P - (K - 1 - k) * d                        # static, >= 0
                col_ref[:, :, k * C:(k + 1) * C] = src_ref[:, off:off + L, :]
            return col_ref[...].reshape(M, KC)

        for i in range(num_layers):
            d = 2 ** i
            w1_ref, b1_ref, w2_ref, b2_ref = layers[i]

            # conv1 (+ fused 1x1 residual conv for block 0: N widened to 2C).
            z = jnp.dot(im2col(x_act, d), w1_ref[...],
                        preferred_element_type=jnp.float32) + b1_ref[...]
            if has_conv3[i]:
                h = jnp.maximum(z[:, :C], 0.0)
                # Stage the residual in VMEM instead of keeping it live in
                # vregs across conv2 (x is no longer needed once col is built).
                x_act[:, P:, :] = z[:, C:].reshape(TB, L, C).astype(compute_dtype)
            else:
                h = jnp.maximum(z, 0.0)
            h_act[:, P:, :] = h.reshape(TB, L, C).astype(compute_dtype)

            # conv2
            y = jnp.dot(im2col(h_act, d), w2_ref[...],
                        preferred_element_type=jnp.float32) + b2_ref[...]
            if i != num_layers - 1:
                y = jnp.maximum(y, 0.0)
            # dropout=0 in the module -> identity, omitted.
            res = x_act[:, P:, :].reshape(M, C).astype(jnp.float32)
            x_act[:, P:, :] = (y + res).reshape(TB, L, C).astype(compute_dtype)

        # final projection: nn.Linear(hidden_dim, target_dim)
        x_fin = x_act[:, P:, :].reshape(M, C)
        out = jnp.dot(x_fin, wp_ref[...],
                      preferred_element_type=jnp.float32) + bp_ref[...]
        out_ref[...] = out.reshape(TB, L, C).astype(out_ref.dtype)

    return kernel


# ---------------------------------------------------------------------------
# Wrapper
# ---------------------------------------------------------------------------
def tcn_generator_forward(z, cond, params, *, num_layers,
                          compute_dtype=jnp.bfloat16, out_dtype=None):
    """Fused Pallas forward pass of _TCNGenerator. Returns (B, L, target_dim)."""
    if out_dtype is None:
        out_dtype = compute_dtype            # bf16 writeback on the fast path

    x = jnp.concatenate([z, cond], axis=2).astype(jnp.float32)
    B, L, Cin = x.shape
    K = params["blocks"][0]["w1"].shape[0]
    hidden = params["blocks"][0]["w1"].shape[-1]
    target_dim = params["w_proj"].shape[-1]

    # Lane-dense channel padding (exact: padded weights / biases are zero).
    C = _round_up(max(Cin, hidden, target_dim), LANE)
    # Causal padding rows for the largest dilation, rounded to a sublane multiple.
    pad_max = (K - 1) * (2 ** (num_layers - 1))
    P = max(SUBLANE, _round_up(pad_max, SUBLANE))

    cd_bytes = jnp.dtype(compute_dtype).itemsize
    out_bytes = jnp.dtype(out_dtype).itemsize

    # ---- pre-stack conv weights: K taps side-by-side -> one matmul per conv.
    def stack_conv(w, b, w3=None, b3=None):
        k_, ci, co = w.shape
        n_out = 2 * C if w3 is not None else C
        W = jnp.zeros((K * C, n_out), jnp.float32)
        for k in range(k_):
            W = W.at[k * C:k * C + ci, :co].set(w[k])
        Bv = jnp.zeros((1, n_out), jnp.float32).at[0, :co].set(b)
        if w3 is not None:
            # 1x1 residual conv fused into the unshifted tap (k = K-1), cols [C:2C)
            ci3, co3 = w3.shape[1], w3.shape[2]
            W = W.at[(K - 1) * C:(K - 1) * C + ci3, C:C + co3].set(w3[0])
            Bv = Bv.at[0, C:C + co3].set(b3)
        return W.astype(compute_dtype), Bv

    w_args, w_specs, has_conv3 = [], [], []
    for blk in params["blocks"]:
        w3, b3 = blk.get("w3"), blk.get("b3")
        W1, B1 = stack_conv(blk["w1"], blk["b1"], w3, b3)
        W2, B2 = stack_conv(blk["w2"], blk["b2"])
        has_conv3.append(w3 is not None)
        w_args += [W1, B1, W2, B2]
        w_specs += [pl.BlockSpec(W1.shape, lambda bi: (0, 0)),
                    pl.BlockSpec(B1.shape, lambda bi: (0, 0)),
                    pl.BlockSpec(W2.shape, lambda bi: (0, 0)),
                    pl.BlockSpec(B2.shape, lambda bi: (0, 0))]

    wp = params["w_proj"][0]                               # (hidden, target)
    WP = jnp.zeros((C, C), jnp.float32).at[:wp.shape[0], :wp.shape[1]].set(wp)
    BP = jnp.zeros((1, C), jnp.float32).at[0, :target_dim].set(params["b_proj"])
    w_args += [WP.astype(compute_dtype), BP]
    w_specs += [pl.BlockSpec((C, C), lambda bi: (0, 0)),
                pl.BlockSpec((1, C), lambda bi: (0, 0))]

    weight_bytes = sum(int(a.size) * int(a.dtype.itemsize) for a in w_args)

    # ---- batch tile: target M = TB*L ~ 512 rows, bounded by VMEM working set.
    def working_set_bytes(tb):
        scratch = (2 * tb * (P + L) * C + tb * L * K * C) * cd_bytes
        io = 2 * tb * L * C * (cd_bytes + out_bytes)       # double-buffered tiles
        return scratch + io + 2 * weight_bytes             # weights double-buffered

    TB = max(1, min(B, max(1, 512 // max(L, 1))))
    while B % TB:
        TB -= 1
    # Keep the resident working set well inside v7x's 64 MiB VMEM.
    while TB > 1 and working_set_bytes(TB) > (24 << 20):
        TB -= 1
        while B % TB:
            TB -= 1
    # Feed both v7x TensorCores (>= 2 grid steps) when M = TB*L stays >= 256.
    if B // TB < 2:
        for cand in range(TB // 2, 0, -1):
            if B % cand == 0 and cand * L >= 256:
                TB = cand
                break
    vmem_limit = int(min(max(2 * working_set_bytes(TB), 32 << 20), 100 << 20))

    x_p = jnp.pad(x, ((0, 0), (0, 0), (0, C - Cin))).astype(compute_dtype)

    kernel = _make_fused_kernel(num_layers=num_layers, K=K, L=L, TB=TB, C=C,
                                P=P, has_conv3=tuple(has_conv3),
                                compute_dtype=compute_dtype)

    out = pl.pallas_call(
        kernel,
        out_shape=jax.ShapeDtypeStruct((B, L, C), out_dtype),
        grid=(B // TB,),
        in_specs=[pl.BlockSpec((TB, L, C), lambda bi: (bi, 0, 0))] + w_specs,
        out_specs=pl.BlockSpec((TB, L, C), lambda bi: (bi, 0, 0)),
        scratch_shapes=[
            pltpu.VMEM((TB, P + L, C), compute_dtype),     # x (+ staged residual)
            pltpu.VMEM((TB, P + L, C), compute_dtype),     # h
            pltpu.VMEM((TB, L, K * C), compute_dtype),     # im2col slab
        ],
        compiler_params=pltpu.CompilerParams(
            dimension_semantics=("parallel",),
            vmem_limit_bytes=vmem_limit),
    )(x_p, *w_args)
    # TODO(synk): for very long sequences, halo-tile the L axis with a
    # (K-1)*d_max halo instead of holding all P+L rows resident (v7x 64 MiB).
    return out[:, :, :target_dim]


# ---------------------------------------------------------------------------
# Pure-JAX reference (PyTorch-exact math, f32) for the correctness check
# ---------------------------------------------------------------------------
def _ref_causal_conv1d(x, w, b, *, dilation, relu, residual=None):
    B, L, _ = x.shape
    K, _, Cout = w.shape
    pad = (K - 1) * dilation
    xpad = jnp.pad(x, ((0, 0), (pad, 0), (0, 0)))
    acc = jnp.zeros((B, L, Cout), jnp.float32) + b[None, None, :]
    for k in range(K):
        acc = acc + jnp.einsum(
            "blc,co->blo", xpad[:, k * dilation:k * dilation + L, :], w[k])
    if relu:
        acc = jnp.maximum(acc, 0.0)
    if residual is not None:
        acc = acc + residual
    return acc


def tcn_generator_reference(z, cond, params, *, num_layers):
    x = jnp.concatenate([z, cond], axis=2).astype(jnp.float32)
    for i in range(num_layers):
        blk = params["blocks"][i]
        d = 2 ** i
        residual = x
        if "w3" in blk:
            residual = _ref_causal_conv1d(x, blk["w3"], blk["b3"],
                                          dilation=1, relu=False)
        h = _ref_causal_conv1d(x, blk["w1"], blk["b1"], dilation=d, relu=True)
        last = i == num_layers - 1
        x = _ref_causal_conv1d(h, blk["w2"], blk["b2"], dilation=d,
                               relu=not last, residual=residual)
    return _ref_causal_conv1d(x, params["w_proj"], params["b_proj"],
                              dilation=1, relu=False)


# ---------------------------------------------------------------------------
# Parameter init (matches _TCNGenerator / darts _ResidualBlock structure)
# ---------------------------------------------------------------------------
def init_params(key, *, latent_dim, condition_dim, kernel_size, hidden_dim,
                target_dim, num_layers):
    input_size = latent_dim + condition_dim
    blocks = []
    for i in range(num_layers):
        in_dim = input_size if i == 0 else hidden_dim
        out_dim = hidden_dim  # target_size == hidden_dim in _TCNGenerator
        key, k1, k2, k3, k4, k5, k6 = jax.random.split(key, 7)
        blk = {
            "w1": 0.1 * jax.random.normal(
                k1, (kernel_size, in_dim, hidden_dim), jnp.float32),
            "b1": 0.1 * jax.random.normal(k2, (hidden_dim,), jnp.float32),
            "w2": 0.1 * jax.random.normal(
                k3, (kernel_size, hidden_dim, out_dim), jnp.float32),
            "b2": 0.1 * jax.random.normal(k4, (out_dim,), jnp.float32),
        }
        if in_dim != out_dim:
            blk["w3"] = 0.1 * jax.random.normal(
                k5, (1, in_dim, out_dim), jnp.float32)
            blk["b3"] = 0.1 * jax.random.normal(k6, (out_dim,), jnp.float32)
        blocks.append(blk)
    key, kp, kb = jax.random.split(key, 3)
    return {
        "blocks": blocks,
        "w_proj": 0.1 * jax.random.normal(
            kp, (1, hidden_dim, target_dim), jnp.float32),
        "b_proj": 0.1 * jax.random.normal(kb, (target_dim,), jnp.float32),
    }


if __name__ == "__main__":
    latent_dim, condition_dim = 4, 3
    kernel_size, hidden_dim, target_dim, num_layers = 3, 32, 5, 2
    B, L = 2, 8

    key = jax.random.PRNGKey(0)
    kz, kc, kp = jax.random.split(key, 3)
    z = jax.random.normal(kz, (B, L, latent_dim), jnp.float32)
    cond = jax.random.normal(kc, (B, L, condition_dim), jnp.float32)
    params = init_params(kp, latent_dim=latent_dim,
                         condition_dim=condition_dim,
                         kernel_size=kernel_size, hidden_dim=hidden_dim,
                         target_dim=target_dim, num_layers=num_layers)

    ref = tcn_generator_reference(z, cond, params, num_layers=num_layers)

    # Exact-math check (f32 matmuls, f32 activations, f32 output).
    fake_f32 = jax.block_until_ready(
        tcn_generator_forward(z, cond, params, num_layers=num_layers,
                              compute_dtype=jnp.float32))
    assert fake_f32.shape == (B, L, target_dim), fake_f32.shape
    assert jnp.allclose(fake_f32, ref, atol=1e-4, rtol=1e-4), (
        float(jnp.max(jnp.abs(fake_f32 - ref))))

    # Fast path (bf16 operands + activations, f32 MXU accumulation, bf16 out).
    fake = jax.block_until_ready(
        tcn_generator_forward(z, cond, params, num_layers=num_layers,
                              compute_dtype=jnp.bfloat16))
    assert fake.shape == (B, L, target_dim), fake.shape
    assert jnp.allclose(fake.astype(jnp.float32), ref, atol=5e-2, rtol=5e-2), (
        float(jnp.max(jnp.abs(fake.astype(jnp.float32) - ref))))

    print("KERNEL_OK")
</pallas_src>

<mosaic_0001>
module attributes {stable_mosaic.version = 11 : i64} {
  func.func @kernel(%arg0: i32, %arg1: memref<2x8x128xf32, #tpu.memory_space<vmem>>, %arg2: memref<384x256xf32, #tpu.memory_space<vmem>>, %arg3: memref<1x256xf32, #tpu.memory_space<vmem>>, %arg4: memref<384x128xf32, #tpu.memory_space<vmem>>, %arg5: memref<1x128xf32, #tpu.memory_space<vmem>>, %arg6: memref<384x128xf32, #tpu.memory_space<vmem>>, %arg7: memref<1x128xf32, #tpu.memory_space<vmem>>, %arg8: memref<384x128xf32, #tpu.memory_space<vmem>>, %arg9: memref<1x128xf32, #tpu.memory_space<vmem>>, %arg10: memref<128x128xf32, #tpu.memory_space<vmem>>, %arg11: memref<1x128xf32, #tpu.memory_space<vmem>>, %arg12: memref<2x8x128xf32, #tpu.memory_space<vmem>>, %arg13: memref<2x16x128xf32, #tpu.memory_space<vmem>>, %arg14: memref<2x16x128xf32, #tpu.memory_space<vmem>>, %arg15: memref<2x8x384xf32, #tpu.memory_space<vmem>>) attributes {dimension_semantics = [#tpu.dimension_semantics<parallel>], iteration_bounds = array<i64: 1>, scalar_prefetch = 0 : i64, scratch_operands = 3 : i64, tpu.core_type = #tpu.core_type<tc>, window_params = [{transform_indices = @transform_0, window_bounds = array<i64: 2, 8, 128>}, {pipeline_mode = #tpu.pipeline_mode<synchronous>, transform_indices = @transform_1, window_bounds = array<i64: 384, 256>}, {pipeline_mode = #tpu.pipeline_mode<synchronous>, transform_indices = @transform_2, window_bounds = array<i64: 1, 256>}, {pipeline_mode = #tpu.pipeline_mode<synchronous>, transform_indices = @transform_3, window_bounds = array<i64: 384, 128>}, {pipeline_mode = #tpu.pipeline_mode<synchronous>, transform_indices = @transform_4, window_bounds = array<i64: 1, 128>}, {pipeline_mode = #tpu.pipeline_mode<synchronous>, transform_indices = @transform_5, window_bounds = array<i64: 384, 128>}, {pipeline_mode = #tpu.pipeline_mode<synchronous>, transform_indices = @transform_6, window_bounds = array<i64: 1, 128>}, {pipeline_mode = #tpu.pipeline_mode<synchronous>, transform_indices = @transform_7, window_bounds = array<i64: 384, 128>}, {pipeline_mode = #tpu.pipeline_mode<synchronous>, transform_indices = @transform_8, window_bounds = array<i64: 1, 128>}, {pipeline_mode = #tpu.pipeline_mode<synchronous>, transform_indices = @transform_9, window_bounds = array<i64: 128, 128>}, {pipeline_mode = #tpu.pipeline_mode<synchronous>, transform_indices = @transform_10, window_bounds = array<i64: 1, 128>}, {transform_indices = @transform_11, window_bounds = array<i64: 2, 8, 128>}]} {
    %cst = arith.constant 0.000000e+00 : f32
    %0 = vector.broadcast %cst : f32 to vector<2x8x128xf32>
    %c0 = arith.constant 0 : index
    %c0_0 = arith.constant 0 : index
    %c0_1 = arith.constant 0 : index
    %1 = vector.load %arg13[%c0, %c0_0, %c0_1] : memref<2x16x128xf32, #tpu.memory_space<vmem>>, vector<2x8x128xf32>
    tpu.vector_store %arg13[%c0, %c0_0, %c0_1], %0 {strides = array<i32>} : memref<2x16x128xf32, #tpu.memory_space<vmem>>, vector<2x8x128xf32>,
    %c0_2 = arith.constant 0 : index
    %c0_3 = arith.constant 0 : index
    %c0_4 = arith.constant 0 : index
    %2 = vector.load %arg14[%c0_2, %c0_3, %c0_4] : memref<2x16x128xf32, #tpu.memory_space<vmem>>, vector<2x8x128xf32>
    tpu.vector_store %arg14[%c0_2, %c0_3, %c0_4], %0 {strides = array<i32>} : memref<2x16x128xf32, #tpu.memory_space<vmem>>, vector<2x8x128xf32>,
    %c0_5 = arith.constant 0 : index
    %c0_6 = arith.constant 0 : index
    %c0_7 = arith.constant 0 : index
    %3 = vector.load %arg1[%c0_5, %c0_6, %c0_7] : memref<2x8x128xf32, #tpu.memory_space<vmem>>, vector<2x8x128xf32>
    %c0_8 = arith.constant 0 : index
    %c8 = arith.constant 8 : index
    %c0_9 = arith.constant 0 : index
    %4 = vector.load %arg13[%c0_8, %c8, %c0_9] : memref<2x16x128xf32, #tpu.memory_space<vmem>>, vector<2x8x128xf32>
    tpu.vector_store %arg13[%c0_8, %c8, %c0_9], %3 {strides = array<i32>} : memref<2x16x128xf32, #tpu.memory_space<vmem>>, vector<2x8x128xf32>,
    %c0_10 = arith.constant 0 : index
    %c6 = arith.constant 6 : index
    %c0_11 = arith.constant 0 : index
    %5 = vector.load %arg13[%c0_10, %c6, %c0_11] : memref<2x16x128xf32, #tpu.memory_space<vmem>>, vector<2x8x128xf32>
    %c0_12 = arith.constant 0 : index
    %c0_13 = arith.constant 0 : index
    %c0_14 = arith.constant 0 : index
    %6 = vector.load %arg15[%c0_12, %c0_13, %c0_14] : memref<2x8x384xf32, #tpu.memory_space<vmem>>, vector<2x8x128xf32>
    tpu.vector_store %arg15[%c0_12, %c0_13, %c0_14], %5 {strides = array<i32>} : memref<2x8x384xf32, #tpu.memory_space<vmem>>, vector<2x8x128xf32>,
    %c0_15 = arith.constant 0 : index
    %c7 = arith.constant 7 : index
    %c0_16 = arith.constant 0 : index
    %7 = vector.load %arg13[%c0_15, %c7, %c0_16] : memref<2x16x128xf32, #tpu.memory_space<vmem>>, vector<2x8x128xf32>
    %c0_17 = arith.constant 0 : index
    %c0_18 = arith.constant 0 : index
    %c128 = arith.constant 128 : index
    %8 = vector.load %arg15[%c0_17, %c0_18, %c128] : memref<2x8x384xf32, #tpu.memory_space<vmem>>, vector<2x8x128xf32>
    tpu.vector_store %arg15[%c0_17, %c0_18, %c128], %7 {strides = array<i32>} : memref<2x8x384xf32, #tpu.memory_space<vmem>>, vector<2x8x128xf32>,
    %c0_19 = arith.constant 0 : index
    %c8_20 = arith.constant 8 : index
    %c0_21 = arith.constant 0 : index
    %9 = vector.load %arg13[%c0_19, %c8_20, %c0_21] : memref<2x16x128xf32, #tpu.memory_space<vmem>>, vector<2x8x128xf32>
    %c0_22 = arith.constant 0 : index
    %c0_23 = arith.constant 0 : index
    %c256 = arith.constant 256 : index
    %10 = vector.load %arg15[%c0_22, %c0_23, %c256] : memref<2x8x384xf32, #tpu.memory_space<vmem>>, vector<2x8x128xf32>
    tpu.vector_store %arg15[%c0_22, %c0_23, %c256], %9 {strides = array<i32>} : memref<2x8x384xf32, #tpu.memory_space<vmem>>, vector<2x8x128xf32>,
    %c0_24 = arith.constant 0 : index
    %c0_25 = arith.constant 0 : index
    %c0_26 = arith.constant 0 : index
    %11 = vector.load %arg15[%c0_24, %c0_25, %c0_26] : memref<2x8x384xf32, #tpu.memory_space<vmem>>, vector<2x8x384xf32>
    %12 = vector.shape_cast %11 : vector<2x8x384xf32> to vector<16x384xf32>
    %c0_27 = arith.constant 0 : index
    %c0_28 = arith.constant 0 : index
    %13 = vector.load %arg2[%c0_27, %c0_28] : memref<384x256xf32, #tpu.memory_space<vmem>>, vector<384x256xf32>
    %cst_29 = arith.constant dense<0.000000e+00> : vector<16x256xf32>
    %14 = tpu.matmul %12, %13, %cst_29 {dimension_numbers = #tpu.dot_dimension_numbers<[1], [0], [0], [1], [0, 0, 1, 1], [], []>} : vector<16x384xf32>, vector<384x256xf32>, vector<16x256xf32> -> vector<16x256xf32>
    %c0_30 = arith.constant 0 : index
    %c0_31 = arith.constant 0 : index
    %15 = vector.load %arg3[%c0_30, %c0_31] : memref<1x256xf32, #tpu.memory_space<vmem>>, vector<1x256xf32>
    %16 = vector.broadcast %15 : vector<1x256xf32> to vector<16x256xf32>
    %17 = arith.addf %14, %16 : vector<16x256xf32>
    %18 = vector.extract_strided_slice %17 {offsets = [0, 0], sizes = [16, 128], strides = [1, 1]} : vector<16x256xf32> to vector<16x128xf32>
    %cst_32 = arith.constant 0.000000e+00 : f32
    %19 = vector.broadcast %cst_32 : f32 to vector<16x128xf32>
    %20 = arith.maximumf %18, %19 : vector<16x128xf32>
    %21 = vector.extract_strided_slice %17 {offsets = [0, 128], sizes = [16, 128], strides = [1, 1]} : vector<16x256xf32> to vector<16x128xf32>
    %22 = vector.shape_cast %21 : vector<16x128xf32> to vector<2x8x128xf32>
    %c0_33 = arith.constant 0 : index
    %c8_34 = arith.constant 8 : index
    %c0_35 = arith.constant 0 : index
    %23 = vector.load %arg13[%c0_33, %c8_34, %c0_35] : memref<2x16x128xf32, #tpu.memory_space<vmem>>, vector<2x8x128xf32>
    tpu.vector_store %arg13[%c0_33, %c8_34, %c0_35], %22 {strides = array<i32>} : memref<2x16x128xf32, #tpu.memory_space<vmem>>, vector<2x8x128xf32>,
    %24 = vector.shape_cast %20 : vector<16x128xf32> to vector<2x8x128xf32>
    %c0_36 = arith.constant 0 : index
    %c8_37 = arith.constant 8 : index
    %c0_38 = arith.constant 0 : index
    %25 = vector.load %arg14[%c0_36, %c8_37, %c0_38] : memref<2x16x128xf32, #tpu.memory_space<vmem>>, vector<2x8x128xf32>
    tpu.vector_store %arg14[%c0_36, %c8_37, %c0_38], %24 {strides = array<i32>} : memref<2x16x128xf32, #tpu.memory_space<vmem>>, vector<2x8x128xf32>,
    %c0_39 = arith.constant 0 : index
    %c6_40 = arith.constant 6 : index
    %c0_41 = arith.constant 0 : index
    %26 = vector.load %arg14[%c0_39, %c6_40, %c0_41] : memref<2x16x128xf32, #tpu.memory_space<vmem>>, vector<2x8x128xf32>
    %c0_42 = arith.constant 0 : index
    %c0_43 = arith.constant 0 : index
    %c0_44 = arith.constant 0 : index
    %27 = vector.load %arg15[%c0_42, %c0_43, %c0_44] : memref<2x8x384xf32, #tpu.memory_space<vmem>>, vector<2x8x128xf32>
    tpu.vector_store %arg15[%c0_42, %c0_43, %c0_44], %26 {strides = array<i32>} : memref<2x8x384xf32, #tpu.memory_space<vmem>>, vector<2x8x128xf32>,
    %c0_45 = arith.constant 0 : index
    %c7_46 = arith.constant 7 : index
    %c0_47 = arith.constant 0 : index
    %28 = vector.load %arg14[%c0_45, %c7_46, %c0_47] : memref<2x16x128xf32, #tpu.memory_space<vmem>>, vector<2x8x128xf32>
    %c0_48 = arith.constant 0 : index
    %c0_49 = arith.constant 0 : index
    %c128_50 = arith.constant 128 : index
    %29 = vector.load %arg15[%c0_48, %c0_49, %c128_50] : memref<2x8x384xf32, #tpu.memory_space<vmem>>, vector<2x8x128xf32>
    tpu.vector_store %arg15[%c0_48, %c0_49, %c128_50], %28 {strides = array<i32>} : memref<2x8x384xf32, #tpu.memory_space<vmem>>, vector<2x8x128xf32>,
    %c0_51 = arith.constant 0 : index
    %c8_52 = arith.constant 8 : index
    %c0_53 = arith.constant 0 : index
    %30 = vector.load %arg14[%c0_51, %c8_52, %c0_53] : memref<2x16x128xf32, #tpu.memory_space<vmem>>, vector<2x8x128xf32>
    %c0_54 = arith.constant 0 : index
    %c0_55 = arith.constant 0 : index
    %c256_56 = arith.constant 256 : index
    %31 = vector.load %arg15[%c0_54, %c0_55, %c256_56] : memref<2x8x384xf32, #tpu.memory_space<vmem>>, vector<2x8x128xf32>
    tpu.vector_store %arg15[%c0_54, %c0_55, %c256_56], %30 {strides = array<i32>} : memref<2x8x384xf32, #tpu.memory_space<vmem>>, vector<2x8x128xf32>,
    %c0_57 = arith.constant 0 : index
    %c0_58 = arith.constant 0 : index
    %c0_59 = arith.constant 0 : index
    %32 = vector.load %arg15[%c0_57, %c0_58, %c0_59] : memref<2x8x384xf32, #tpu.memory_space<vmem>>, vector<2x8x384xf32>
    %33 = vector.shape_cast %32 : vector<2x8x384xf32> to vector<16x384xf32>
    %c0_60 = arith.constant 0 : index
    %c0_61 = arith.constant 0 : index
    %34 = vector.load %arg4[%c0_60, %c0_61] : memref<384x128xf32, #tpu.memory_space<vmem>>, vector<384x128xf32>
    %cst_62 = arith.constant dense<0.000000e+00> : vector<16x128xf32>
    %35 = tpu.matmul %33, %34, %cst_62 {dimension_numbers = #tpu.dot_dimension_numbers<[1], [0], [0], [1], [0, 0, 1, 1], [], []>} : vector<16x384xf32>, vector<384x128xf32>, vector<16x128xf32> -> vector<16x128xf32>
    %c0_63 = arith.constant 0 : index
    %c0_64 = arith.constant 0 : index
    %36 = vector.load %arg5[%c0_63, %c0_64] : memref<1x128xf32, #tpu.memory_space<vmem>>, vector<1x128xf32>
    %37 = vector.broadcast %36 : vector<1x128xf32> to vector<16x128xf32>
    %38 = arith.addf %35, %37 : vector<16x128xf32>
    %cst_65 = arith.constant 0.000000e+00 : f32
    %39 = vector.broadcast %cst_65 : f32 to vector<16x128xf32>
    %40 = arith.maximumf %38, %39 : vector<16x128xf32>
    %c0_66 = arith.constant 0 : index
    %c8_67 = arith.constant 8 : index
    %c0_68 = arith.constant 0 : index
    %41 = vector.load %arg13[%c0_66, %c8_67, %c0_68] : memref<2x16x128xf32, #tpu.memory_space<vmem>>, vector<2x8x128xf32>
    %42 = vector.shape_cast %41 : vector<2x8x128xf32> to vector<16x128xf32>
    %43 = arith.addf %40, %42 : vector<16x128xf32>
    %44 = vector.shape_cast %43 : vector<16x128xf32> to vector<2x8x128xf32>
    %c0_69 = arith.constant 0 : index
    %c8_70 = arith.constant 8 : index
    %c0_71 = arith.constant 0 : index
    %45 = vector.load %arg13[%c0_69, %c8_70, %c0_71] : memref<2x16x128xf32, #tpu.memory_space<vmem>>, vector<2x8x128xf32>
    tpu.vector_store %arg13[%c0_69, %c8_70, %c0_71], %44 {strides = array<i32>} : memref<2x16x128xf32, #tpu.memory_space<vmem>>, vector<2x8x128xf32>,
    %c0_72 = arith.constant 0 : index
    %c4 = arith.constant 4 : index
    %c0_73 = arith.constant 0 : index
    %46 = vector.load %arg13[%c0_72, %c4, %c0_73] : memref<2x16x128xf32, #tpu.memory_space<vmem>>, vector<2x8x128xf32>
    %c0_74 = arith.constant 0 : index
    %c0_75 = arith.constant 0 : index
    %c0_76 = arith.constant 0 : index
    %47 = vector.load %arg15[%c0_74, %c0_75, %c0_76] : memref<2x8x384xf32, #tpu.memory_space<vmem>>, vector<2x8x128xf32>
    tpu.vector_store %arg15[%c0_74, %c0_75, %c0_76], %46 {strides = array<i32>} : memref<2x8x384xf32, #tpu.memory_space<vmem>>, vector<2x8x128xf32>,
    %c0_77 = arith.constant 0 : index
    %c6_78 = arith.constant 6 : index
    %c0_79 = arith.constant 0 : index
    %48 = vector.load %arg13[%c0_77, %c6_78, %c0_79] : memref<2x16x128xf32, #tpu.memory_space<vmem>>, vector<2x8x128xf32>
    %c0_80 = arith.constant 0 : index
    %c0_81 = arith.constant 0 : index
    %c128_82 = arith.constant 128 : index
    %49 = vector.load %arg15[%c0_80, %c0_81, %c128_82] : memref<2x8x384xf32, #tpu.memory_space<vmem>>, vector<2x8x128xf32>
    tpu.vector_store %arg15[%c0_80, %c0_81, %c128_82], %48 {strides = array<i32>} : memref<2x8x384xf32, #tpu.memory_space<vmem>>, vector<2x8x128xf32>,
    %c0_83 = arith.constant 0 : index
    %c8_84 = arith.constant 8 : index
    %c0_85 = arith.constant 0 : index
    %50 = vector.load %arg13[%c0_83, %c8_84, %c0_85] : memref<2x16x128xf32, #tpu.memory_space<vmem>>, vector<2x8x128xf32>
    %c0_86 = arith.constant 0 : index
    %c0_87 = arith.constant 0 : index
    %c256_88 = arith.constant 256 : index
    %51 = vector.load %arg15[%c0_86, %c0_87, %c256_88] : memref<2x8x384xf32, #tpu.memory_space<vmem>>, vector<2x8x128xf32>
    tpu.vector_store %arg15[%c0_86, %c0_87, %c256_88], %50 {strides = array<i32>} : memref<2x8x384xf32, #tpu.memory_space<vmem>>, vector<2x8x128xf32>,
    %c0_89 = arith.constant 0 : index
    %c0_90 = arith.constant 0 : index
    %c0_91 = arith.constant 0 : index
    %52 = vector.load %arg15[%c0_89, %c0_90, %c0_91] : memref<2x8x384xf32, #tpu.memory_space<vmem>>, vector<2x8x384xf32>
    %53 = vector.shape_cast %52 : vector<2x8x384xf32> to vector<16x384xf32>
    %c0_92 = arith.constant 0 : index
    %c0_93 = arith.constant 0 : index
    %54 = vector.load %arg6[%c0_92, %c0_93] : memref<384x128xf32, #tpu.memory_space<vmem>>, vector<384x128xf32>
    %cst_94 = arith.constant dense<0.000000e+00> : vector<16x128xf32>
    %55 = tpu.matmul %53, %54, %cst_94 {dimension_numbers = #tpu.dot_dimension_numbers<[1], [0], [0], [1], [0, 0, 1, 1], [], []>} : vector<16x384xf32>, vector<384x128xf32>, vector<16x128xf32> -> vector<16x128xf32>
    %c0_95 = arith.constant 0 : index
    %c0_96 = arith.constant 0 : index
    %56 = vector.load %arg7[%c0_95, %c0_96] : memref<1x128xf32, #tpu.memory_space<vmem>>, vector<1x128xf32>
    %57 = vector.broadcast %56 : vector<1x128xf32> to vector<16x128xf32>
    %58 = arith.addf %55, %57 : vector<16x128xf32>
    %cst_97 = arith.constant 0.000000e+00 : f32
    %59 = vector.broadcast %cst_97 : f32 to vector<16x128xf32>
    %60 = arith.maximumf %58, %59 : vector<16x128xf32>
    %61 = vector.shape_cast %60 : vector<16x128xf32> to vector<2x8x128xf32>
    %c0_98 = arith.constant 0 : index
    %c8_99 = arith.constant 8 : index
    %c0_100 = arith.constant 0 : index
    %62 = vector.load %arg14[%c0_98, %c8_99, %c0_100] : memref<2x16x128xf32, #tpu.memory_space<vmem>>, vector<2x8x128xf32>
    tpu.vector_store %arg14[%c0_98, %c8_99, %c0_100], %61 {strides = array<i32>} : memref<2x16x128xf32, #tpu.memory_space<vmem>>, vector<2x8x128xf32>,
    %c0_101 = arith.constant 0 : index
    %c4_102 = arith.constant 4 : index
    %c0_103 = arith.constant 0 : index
    %63 = vector.load %arg14[%c0_101, %c4_102, %c0_103] : memref<2x16x128xf32, #tpu.memory_space<vmem>>, vector<2x8x128xf32>
    %c0_104 = arith.constant 0 : index
    %c0_105 = arith.constant 0 : index
    %c0_106 = arith.constant 0 : index
    %64 = vector.load %arg15[%c0_104, %c0_105, %c0_106] : memref<2x8x384xf32, #tpu.memory_space<vmem>>, vector<2x8x128xf32>
    tpu.vector_store %arg15[%c0_104, %c0_105, %c0_106], %63 {strides = array<i32>} : memref<2x8x384xf32, #tpu.memory_space<vmem>>, vector<2x8x128xf32>,
    %c0_107 = arith.constant 0 : index
    %c6_108 = arith.constant 6 : index
    %c0_109 = arith.constant 0 : index
    %65 = vector.load %arg14[%c0_107, %c6_108, %c0_109] : memref<2x16x128xf32, #tpu.memory_space<vmem>>, vector<2x8x128xf32>
    %c0_110 = arith.constant 0 : index
    %c0_111 = arith.constant 0 : index
    %c128_112 = arith.constant 128 : index
    %66 = vector.load %arg15[%c0_110, %c0_111, %c128_112] : memref<2x8x384xf32, #tpu.memory_space<vmem>>, vector<2x8x128xf32>
    tpu.vector_store %arg15[%c0_110, %c0_111, %c128_112], %65 {strides = array<i32>} : memref<2x8x384xf32, #tpu.memory_space<vmem>>, vector<2x8x128xf32>,
    %c0_113 = arith.constant 0 : index
    %c8_114 = arith.constant 8 : index
    %c0_115 = arith.constant 0 : index
    %67 = vector.load %arg14[%c0_113, %c8_114, %c0_115] : memref<2x16x128xf32, #tpu.memory_space<vmem>>, vector<2x8x128xf32>
    %c0_116 = arith.constant 0 : index
    %c0_117 = arith.constant 0 : index
    %c256_118 = arith.constant 256 : index
    %68 = vector.load %arg15[%c0_116, %c0_117, %c256_118] : memref<2x8x384xf32, #tpu.memory_space<vmem>>, vector<2x8x128xf32>
    tpu.vector_store %arg15[%c0_116, %c0_117, %c256_118], %67 {strides = array<i32>} : memref<2x8x384xf32, #tpu.memory_space<vmem>>, vector<2x8x128xf32>,
    %c0_119 = arith.constant 0 : index
    %c0_120 = arith.constant 0 : index
    %c0_121 = arith.constant 0 : index
    %69 = vector.load %arg15[%c0_119, %c0_120, %c0_121] : memref<2x8x384xf32, #tpu.memory_space<vmem>>, vector<2x8x384xf32>
    %70 = vector.shape_cast %69 : vector<2x8x384xf32> to vector<16x384xf32>
    %c0_122 = arith.constant 0 : index
    %c0_123 = arith.constant 0 : index
    %71 = vector.load %arg8[%c0_122, %c0_123] : memref<384x128xf32, #tpu.memory_space<vmem>>, vector<384x128xf32>
    %cst_124 = arith.constant dense<0.000000e+00> : vector<16x128xf32>
    %72 = tpu.matmul %70, %71, %cst_124 {dimension_numbers = #tpu.dot_dimension_numbers<[1], [0], [0], [1], [0, 0, 1, 1], [], []>} : vector<16x384xf32>, vector<384x128xf32>, vector<16x128xf32> -> vector<16x128xf32>
    %c0_125 = arith.constant 0 : index
    %c0_126 = arith.constant 0 : index
    %73 = vector.load %arg9[%c0_125, %c0_126] : memref<1x128xf32, #tpu.memory_space<vmem>>, vector<1x128xf32>
    %74 = vector.broadcast %73 : vector<1x128xf32> to vector<16x128xf32>
    %75 = arith.addf %72, %74 : vector<16x128xf32>
    %c0_127 = arith.constant 0 : index
    %c8_128 = arith.constant 8 : index
    %c0_129 = arith.constant 0 : index
    %76 = vector.load %arg13[%c0_127, %c8_128, %c0_129] : memref<2x16x128xf32, #tpu.memory_space<vmem>>, vector<2x8x128xf32>
    %77 = vector.shape_cast %76 : vector<2x8x128xf32> to vector<16x128xf32>
    %78 = arith.addf %75, %77 : vector<16x128xf32>
    %79 = vector.shape_cast %78 : vector<16x128xf32> to vector<2x8x128xf32>
    %c0_130 = arith.constant 0 : index
    %c8_131 = arith.constant 8 : index
    %c0_132 = arith.constant 0 : index
    %80 = vector.load %arg13[%c0_130, %c8_131, %c0_132] : memref<2x16x128xf32, #tpu.memory_space<vmem>>, vector<2x8x128xf32>
    tpu.vector_store %arg13[%c0_130, %c8_131, %c0_132], %79 {strides = array<i32>} : memref<2x16x128xf32, #tpu.memory_space<vmem>>, vector<2x8x128xf32>,
    %c0_133 = arith.constant 0 : index
    %c8_134 = arith.constant 8 : index
    %c0_135 = arith.constant 0 : index
    %81 = vector.load %arg13[%c0_133, %c8_134, %c0_135] : memref<2x16x128xf32, #tpu.memory_space<vmem>>, vector<2x8x128xf32>
    %82 = vector.shape_cast %81 : vector<2x8x128xf32> to vector<16x128xf32>
    %c0_136 = arith.constant 0 : index
    %c0_137 = arith.constant 0 : index
    %83 = vector.load %arg10[%c0_136, %c0_137] : memref<128x128xf32, #tpu.memory_space<vmem>>, vector<128x128xf32>
    %cst_138 = arith.constant dense<0.000000e+00> : vector<16x128xf32>
    %84 = tpu.matmul %82, %83, %cst_138 {dimension_numbers = #tpu.dot_dimension_numbers<[1], [0], [0], [1], [0, 0, 1, 1], [], []>} : vector<16x128xf32>, vector<128x128xf32>, vector<16x128xf32> -> vector<16x128xf32>
    %c0_139 = arith.constant 0 : index
    %c0_140 = arith.constant 0 : index
    %85 = vector.load %arg11[%c0_139, %c0_140] : memref<1x128xf32, #tpu.memory_space<vmem>>, vector<1x128xf32>
    %86 = vector.broadcast %85 : vector<1x128xf32> to vector<16x128xf32>
    %87 = arith.addf %84, %86 : vector<16x128xf32>
    %88 = vector.shape_cast %87 : vector<16x128xf32> to vector<2x8x128xf32>
    %c0_141 = arith.constant 0 : index
    %c0_142 = arith.constant 0 : index
    %c0_143 = arith.constant 0 : index
    %89 = vector.load %arg12[%c0_141, %c0_142, %c0_143] : memref<2x8x128xf32, #tpu.memory_space<vmem>>, vector<2x8x128xf32>
    tpu.vector_store %arg12[%c0_141, %c0_142, %c0_143], %88 {strides = array<i32>} : memref<2x8x128xf32, #tpu.memory_space<vmem>>, vector<2x8x128xf32>,
    return
  }
  func.func @transform_0(%arg0: i32) -> (i32, i32, i32) {
    %c0_i32 = arith.constant 0 : i32
    %c0_i32_0 = arith.constant 0 : i32
    %c0_i32_1 = arith.constant 0 : i32
    return %arg0, %c0_i32, %c0_i32_0 : i32, i32, i32
  }
  func.func @transform_1(%arg0: i32) -> (i32, i32) {
    %c0_i32 = arith.constant 0 : i32
    %c0_i32_0 = arith.constant 0 : i32
    %c0_i32_1 = arith.constant 0 : i32
    return %c0_i32, %c0_i32_0 : i32, i32
  }
  func.func @transform_2(%arg0: i32) -> (i32, i32) {
    %c0_i32 = arith.constant 0 : i32
    %c0_i32_0 = arith.constant 0 : i32
    %c0_i32_1 = arith.constant 0 : i32
    return %c0_i32, %c0_i32_0 : i32, i32
  }
  func.func @transform_3(%arg0: i32) -> (i32, i32) {
    %c0_i32 = arith.constant 0 : i32
    %c0_i32_0 = arith.constant 0 : i32
    %c0_i32_1 = arith.constant 0 : i32
    return %c0_i32, %c0_i32_0 : i32, i32
  }
  func.func @transform_4(%arg0: i32) -> (i32, i32) {
    %c0_i32 = arith.constant 0 : i32
    %c0_i32_0 = arith.constant 0 : i32
    %c0_i32_1 = arith.constant 0 : i32
    return %c0_i32, %c0_i32_0 : i32, i32
  }
  func.func @transform_5(%arg0: i32) -> (i32, i32) {
    %c0_i32 = arith.constant 0 : i32
    %c0_i32_0 = arith.constant 0 : i32
    %c0_i32_1 = arith.constant 0 : i32
    return %c0_i32, %c0_i32_0 : i32, i32
  }
  func.func @transform_6(%arg0: i32) -> (i32, i32) {
    %c0_i32 = arith.constant 0 : i32
    %c0_i32_0 = arith.constant 0 : i32
    %c0_i32_1 = arith.constant 0 : i32
    return %c0_i32, %c0_i32_0 : i32, i32
  }
  func.func @transform_7(%arg0: i32) -> (i32, i32) {
    %c0_i32 = arith.constant 0 : i32
    %c0_i32_0 = arith.constant 0 : i32
    %c0_i32_1 = arith.constant 0 : i32
    return %c0_i32, %c0_i32_0 : i32, i32
  }
  func.func @transform_8(%arg0: i32) -> (i32, i32) {
    %c0_i32 = arith.constant 0 : i32
    %c0_i32_0 = arith.constant 0 : i32
    %c0_i32_1 = arith.constant 0 : i32
    return %c0_i32, %c0_i32_0 : i32, i32
  }
  func.func @transform_9(%arg0: i32) -> (i32, i32) {
    %c0_i32 = arith.constant 0 : i32
    %c0_i32_0 = arith.constant 0 : i32
    %c0_i32_1 = arith.constant 0 : i32
    return %c0_i32, %c0_i32_0 : i32, i32
  }
  func.func @transform_10(%arg0: i32) -> (i32, i32) {
    %c0_i32 = arith.constant 0 : i32
    %c0_i32_0 = arith.constant 0 : i32
    %c0_i32_1 = arith.constant 0 : i32
    return %c0_i32, %c0_i32_0 : i32, i32
  }
  func.func @transform_11(%arg0: i32) -> (i32, i32, i32) {
    %c0_i32 = arith.constant 0 : i32
    %c0_i32_0 = arith.constant 0 : i32
    %c0_i32_1 = arith.constant 0 : i32
    return %arg0, %c0_i32, %c0_i32_0 : i32, i32, i32
  }
}

</mosaic_0001>

<llo_original>
// kernel: tpu_custom_call.1
$region0: #{tpu_custom_call.1}
  #allocation0 [shape = 'u32[]', space=smem, size = 0x4, offset = 0x4, fixed_abs, tag = 'smem constant byte address 0x4 - core index']
  #allocation1 [shape = 'u32[72,128]{1,0:T(1,128)}', space=vmem, size = 0x9000, scoped, tag = 'internal scratch']
  #allocation2 [shape = 'f32[2,16,128]{2,1,0:T(8,128)}', space=vmem, size = 0x4000, scoped, tag = 'scratch operand']
  #allocation3 [shape = 'f32[2,16,128]{2,1,0:T(8,128)}', space=vmem, size = 0x4000, scoped, tag = 'scratch operand']
  #allocation4 [shape = 'f32[2,8,384]{2,1,0:T(8,128)}', space=vmem, size = 0x6000, scoped, tag = 'scratch operand']
  %s0 = inlined_call_operand.hbm [shape: f32[2,8,128], index: 0, kind: input, shape index: {}]
  %s1 = inlined_call_operand.hbm [shape: f32[384,256], index: 1, kind: input, shape index: {}]
  %s2 = inlined_call_operand.hbm [shape: f32[1,256], index: 2, kind: input, shape index: {}]
  %s3 = inlined_call_operand.hbm [shape: f32[384,128], index: 3, kind: input, shape index: {}]
  %s4 = inlined_call_operand.vmem [shape: f32[1,128], index: 4, kind: input, shape index: {}]
  %s5 = inlined_call_operand.hbm [shape: f32[384,128], index: 5, kind: input, shape index: {}]
  %s6 = inlined_call_operand.vmem [shape: f32[1,128], index: 6, kind: input, shape index: {}]
  %s7 = inlined_call_operand.hbm [shape: f32[384,128], index: 7, kind: input, shape index: {}]
  %s8 = inlined_call_operand.vmem [shape: f32[1,128], index: 8, kind: input, shape index: {}]
  %s9 = inlined_call_operand.hbm [shape: f32[128,128], index: 9, kind: input, shape index: {}]
  %s10 = inlined_call_operand.vmem [shape: f32[1,128], index: 10, kind: input, shape index: {}]
  %s11 = inlined_call_operand.hbm [shape: f32[2,8,128], index: 11, kind: output, shape index: {}]
  %s12 = sld [smem:[#allocation0]]
  $region82: #{tpu_custom_call.1} parent=0
    _
  %s14 = ssub.s32 1, %s12
  %s15 = scalar_select 0, %s14, %s12
  $region1: #{tpu_custom_call.1} parent=0
    #allocation5 [shape = 'u8[8192]{0}', space=vmem, size = 0x2000, scoped, tag = 'input window, operand 0, single buffered']
    #allocation6 [shape = 's32[1]{0}', space=sflag, size = 0x4, scoped, tag = 'scoped memory for tpu_custom_call.1']
    #allocation7 [shape = 's32[1]{0}', space=sflag, size = 0x4, scoped, tag = 'scoped memory for tpu_custom_call.1']
    #allocation8 [shape = 'u8[393216]{0}', space=vmem, size = 0x60000, scoped, tag = 'input window, operand 1, single buffered']
    #allocation9 [shape = 's32[1]{0}', space=sflag, size = 0x4, scoped, tag = 'scoped memory for tpu_custom_call.1']
    #allocation10 [shape = 'u8[1024]{0}', space=vmem, size = 0x400, scoped, tag = 'input window, operand 2, single buffered']
    #allocation11 [shape = 'u8[196608]{0}', space=vmem, size = 0x30000, scoped, tag = 'input window, operand 3, single buffered']
    #allocation12 [shape = 's32[1]{0}', space=sflag, size = 0x4, scoped, tag = 'scoped memory for tpu_custom_call.1']
    #allocation13 [shape = 'u8[196608]{0}', space=vmem, size = 0x30000, scoped, tag = 'input window, operand 5, single buffered']
    #allocation14 [shape = 'u8[196608]{0}', space=vmem, size = 0x30000, scoped, tag = 'input window, operand 7, single buffered']
    #allocation15 [shape = 's32[1]{0}', space=sflag, size = 0x4, scoped, tag = 'scoped memory for tpu_custom_call.1']
    #allocation16 [shape = 'u8[65536]{0}', space=vmem, size = 0x10000, scoped, tag = 'input window, operand 9, single buffered']
    #allocation17 [shape = 'u8[8192]{0}', space=vmem, size = 0x2000, scoped, tag = 'output window, operand 0, single buffered']
    %16 = vsyncpa [#allocation6], 0
    %17 = vsyncpa [#allocation9], 0
    %18 = vsyncpa [#allocation12], 0
    %19 = vsyncpa [#allocation15], 0
    %20 = vsyncpa [#allocation7], 0
    // Predicated region
    $region2: #{tpu_custom_call.1} parent=1 // pred_check
      _
    $region3: #{tpu_custom_call.1} parent=1 // pred_check_branch
      %22 = sbr.rel (0) target = $region5
    $region4: #{tpu_custom_call.1} parent=1 // pred_region
      %24 = vsyncadd [#allocation6], 0
      %s25 = sshll.u32 %s0, 4
      %s26 = int_to_ptr.hbm [resolvable:$true] %s25
      %s27 = sshll.u32 [#allocation5], 4
      %s28 = int_to_ptr.vmem [resolvable:$true] %s27
      %33 = dma.hbm_to_vmem [thread:$0]  %s26, 256, %s28, [#allocation6], 128, 128, 8
    $region5: #{tpu_custom_call.1} parent=1 // pred_fallthru
      _
    // Predicated region
    $region6: #{tpu_custom_call.1} parent=1 // pred_check
      _
    $region7: #{tpu_custom_call.1} parent=1 // pred_check_branch
      %35 = sbr.rel (0) target = $region9
    $region8: #{tpu_custom_call.1} parent=1 // pred_region
      %37 = vsyncadd [#allocation9], 0
      %s38 = sshll.u32 %s1, 4
      %s39 = int_to_ptr.hbm [resolvable:$true] %s38
      %s40 = sshll.u32 [#allocation8], 4
      %s41 = int_to_ptr.vmem [resolvable:$true] %s40
      %46 = dma.hbm_to_vmem [thread:$0]  %s39, 12288, %s41, [#allocation9], 256, 256, 16
    $region9: #{tpu_custom_call.1} parent=1 // pred_fallthru
      _
    // Predicated region
    $region10: #{tpu_custom_call.1} parent=1 // pred_check
      _
    $region11: #{tpu_custom_call.1} parent=1 // pred_check_branch
      %48 = sbr.rel (0) target = $region13
    $region12: #{tpu_custom_call.1} parent=1 // pred_region
      %50 = vsyncadd [#allocation9], 0
      %s52 = sshll.u32 %s2, 4
      %s53 = int_to_ptr.hbm [resolvable:$true] %s52
      %s54 = sshll.u32 [#allocation10], 4
      %s55 = int_to_ptr.vmem [resolvable:$true] %s54
      %57 = dma.hbm_to_vmem [thread:$0]  %s53, 32, %s55, [#allocation9]
    $region13: #{tpu_custom_call.1} parent=1 // pred_fallthru
      _
    // Predicated region
    $region14: #{tpu_custom_call.1} parent=1 // pred_check
      _
    $region15: #{tpu_custom_call.1} parent=1 // pred_check_branch
      %59 = sbr.rel (0) target = $region17
    $region16: #{tpu_custom_call.1} parent=1 // pred_region
      %61 = vsyncadd [#allocation12], 0
      %s62 = sshll.u32 %s3, 4
      %s63 = int_to_ptr.hbm [resolvable:$true] %s62
      %s64 = sshll.u32 [#allocation11], 4
      %s65 = int_to_ptr.vmem [resolvable:$true] %s64
      %70 = dma.hbm_to_vmem [thread:$0]  %s63, 6144, %s65, [#allocation12], 128, 128, 8
    $region17: #{tpu_custom_call.1} parent=1 // pred_fallthru
      _
    // Predicated region
    $region18: #{tpu_custom_call.1} parent=1 // pred_check
      _
    $region19: #{tpu_custom_call.1} parent=1 // pred_check_branch
      %72 = sbr.rel (0) target = $region21
    $region20: #{tpu_custom_call.1} parent=1 // pred_region
      _
    $region21: #{tpu_custom_call.1} parent=1 // pred_fallthru
      _
    // Predicated region
    $region22: #{tpu_custom_call.1} parent=1 // pred_check
      _
    $region23: #{tpu_custom_call.1} parent=1 // pred_check_branch
      %74 = sbr.rel (0) target = $region25
    $region24: #{tpu_custom_call.1} parent=1 // pred_region
      %76 = vsyncadd [#allocation12], 0
      %s77 = sshll.u32 %s5, 4
      %s78 = int_to_ptr.hbm [resolvable:$true] %s77
      %s79 = sshll.u32 [#allocation13], 4
      %s80 = int_to_ptr.vmem [resolvable:$true] %s79
      %85 = dma.hbm_to_vmem [thread:$0]  %s78, 6144, %s80, [#allocation12], 128, 128, 8
    $region25: #{tpu_custom_call.1} parent=1 // pred_fallthru
      _
    // Predicated region
    $region26: #{tpu_custom_call.1} parent=1 // pred_check
      _
    $region27: #{tpu_custom_call.1} parent=1 // pred_check_branch
      %87 = sbr.rel (0) target = $region29
    $region28: #{tpu_custom_call.1} parent=1 // pred_region
      _
    $region29: #{tpu_custom_call.1} parent=1 // pred_fallthru
      _
    // Predicated region
    $region30: #{tpu_custom_call.1} parent=1 // pred_check
      _
    $region31: #{tpu_custom_call.1} parent=1 // pred_check_branch
      %89 = sbr.rel (0) target = $region33
    $region32: #{tpu_custom_call.1} parent=1 // pred_region
      %91 = vsyncadd [#allocation15], 0
      %s92 = sshll.u32 %s7, 4
      %s93 = int_to_ptr.hbm [resolvable:$true] %s92
      %s94 = sshll.u32 [#allocation14], 4
      %s95 = int_to_ptr.vmem [resolvable:$true] %s94
      %100 = dma.hbm_to_vmem [thread:$0]  %s93, 6144, %s95, [#allocation15], 128, 128, 8
    $region33: #{tpu_custom_call.1} parent=1 // pred_fallthru
      _
    // Predicated region
    $region34: #{tpu_custom_call.1} parent=1 // pred_check
      _
    $region35: #{tpu_custom_call.1} parent=1 // pred_check_branch
      %102 = sbr.rel (0) target = $region37
    $region36: #{tpu_custom_call.1} parent=1 // pred_region
      _
    $region37: #{tpu_custom_call.1} parent=1 // pred_fallthru
      _
    // Predicated region
    $region38: #{tpu_custom_call.1} parent=1 // pred_check
      _
    $region39: #{tpu_custom_call.1} parent=1 // pred_check_branch
      %104 = sbr.rel (0) target = $region41
    $region40: #{tpu_custom_call.1} parent=1 // pred_region
      %106 = vsyncadd [#allocation15], 0
      %s107 = sshll.u32 %s9, 4
      %s108 = int_to_ptr.hbm [resolvable:$true] %s107
      %s109 = sshll.u32 [#allocation16], 4
      %s110 = int_to_ptr.vmem [resolvable:$true] %s109
      %115 = dma.hbm_to_vmem [thread:$0]  %s108, 2048, %s110, [#allocation15], 128, 128, 8
    $region41: #{tpu_custom_call.1} parent=1 // pred_fallthru
      _
    // Predicated region
    $region42: #{tpu_custom_call.1} parent=1 // pred_check
      _
    $region43: #{tpu_custom_call.1} parent=1 // pred_check_branch
      %117 = sbr.rel (0) target = $region45
    $region44: #{tpu_custom_call.1} parent=1 // pred_region
      _
    $region45: #{tpu_custom_call.1} parent=1 // pred_fallthru
      _
    // Predicated region
    $region46: #{tpu_custom_call.1} parent=1 // pred_check
      _
    $region47: #{tpu_custom_call.1} parent=1 // pred_check_branch
      %119 = sbr.rel (0) target = $region49
    $region48: #{tpu_custom_call.1} parent=1 // pred_region
      %121 = dma.done [#allocation6], 256
    $region49: #{tpu_custom_call.1} parent=1 // pred_fallthru
      _
    // Predicated region
    $region50: #{tpu_custom_call.1} parent=1 // pred_check
      _
    $region51: #{tpu_custom_call.1} parent=1 // pred_check_branch
      %123 = sbr.rel (0) target = $region53
    $region52: #{tpu_custom_call.1} parent=1 // pred_region
      %125 = dma.done [#allocation9], 12288
    $region53: #{tpu_custom_call.1} parent=1 // pred_fallthru
      _
    // Predicated region
    $region54: #{tpu_custom_call.1} parent=1 // pred_check
      _
    $region55: #{tpu_custom_call.1} parent=1 // pred_check_branch
      %127 = sbr.rel (0) target = $region57
    $region56: #{tpu_custom_call.1} parent=1 // pred_region
      %129 = dma.done [#allocation9], 32
    $region57: #{tpu_custom_call.1} parent=1 // pred_fallthru
      _
    // Predicated region
    $region58: #{tpu_custom_call.1} parent=1 // pred_check
      _
    $region59: #{tpu_custom_call.1} parent=1 // pred_check_branch
      %131 = sbr.rel (0) target = $region61
    $region60: #{tpu_custom_call.1} parent=1 // pred_region
      %133 = dma.done [#allocation12], 6144
    $region61: #{tpu_custom_call.1} parent=1 // pred_fallthru
      _
    // Predicated region
    $region62: #{tpu_custom_call.1} parent=1 // pred_check
      _
    $region63: #{tpu_custom_call.1} parent=1 // pred_check_branch
      %135 = sbr.rel (0) target = $region65
    $region64: #{tpu_custom_call.1} parent=1 // pred_region
      %137 = dma.done [#allocation12], 6144
    $region65: #{tpu_custom_call.1} parent=1 // pred_fallthru
      _
    // Predicated region
    $region66: #{tpu_custom_call.1} parent=1 // pred_check
      _
    $region67: #{tpu_custom_call.1} parent=1 // pred_check_branch
      %139 = sbr.rel (0) target = $region69
    $region68: #{tpu_custom_call.1} parent=1 // pred_region
      %141 = dma.done [#allocation15], 6144
    $region69: #{tpu_custom_call.1} parent=1 // pred_fallthru
      _
    // Predicated region
    $region70: #{tpu_custom_call.1} parent=1 // pred_check
      _
    $region71: #{tpu_custom_call.1} parent=1 // pred_check_branch
      %143 = sbr.rel (0) target = $region73
    $region72: #{tpu_custom_call.1} parent=1 // pred_region
      %145 = dma.done [#allocation15], 2048
    $region73: #{tpu_custom_call.1} parent=1 // pred_fallthru
      _
    %146 = vst [vmem:[#allocation2] sm:$0xff] 0.0
    %147 = vst [vmem:[#allocation2 + $0x10] sm:$0xff] 0.0
    %148 = vst [vmem:[#allocation3] sm:$0xff] 0.0
    %149 = vst [vmem:[#allocation3 + $0x10] sm:$0xff] 0.0
    %v150 = vld [vmem:[#allocation5] sm:$0xff]
    %v151 = vld [vmem:[#allocation5 + $0x8] sm:$0xff]
    %152 = vst [vmem:[#allocation2 + $0x8] sm:$0xff] %v150
    %153 = vst [vmem:[#allocation2 + $0x18] sm:$0xff] %v151
    %v154 = vld [vmem:[#allocation2 + $0x6] sm:$0xff]
    %v155 = vld [vmem:[#allocation2 + $0x16] sm:$0xff]
    %156 = vst [vmem:[#allocation4] sm:$0xff] %v154
    %157 = vst [vmem:[#allocation4 + $0x18] sm:$0xff] %v155
    %v158 = vld [vmem:[#allocation2 + $0x7] sm:$0xff]
    %v159 = vld [vmem:[#allocation2 + $0x17] sm:$0xff]
    %160 = vst [vmem:[#allocation4 + $0x8] sm:$0xff] %v158
    %161 = vst [vmem:[#allocation4 + $0x20] sm:$0xff] %v159
    %v162 = vld [vmem:[#allocation2 + $0x8] sm:$0xff]
    %v163 = vld [vmem:[#allocation2 + $0x18] sm:$0xff]
    %164 = vst [vmem:[#allocation4 + $0x10] sm:$0xff] %v162
    %165 = vst [vmem:[#allocation4 + $0x28] sm:$0xff] %v163
    %v166 = vld [vmem:[#allocation4] sm:$0xff]
    %v167 = vld [vmem:[#allocation4 + $0x8] sm:$0xff]
    %v168 = vld [vmem:[#allocation4 + $0x10] sm:$0xff]
    %v169 = vld [vmem:[#allocation4 + $0x18] sm:$0xff]
    %v170 = vld [vmem:[#allocation4 + $0x20] sm:$0xff]
    %v171 = vld [vmem:[#allocation4 + $0x28] sm:$0xff]
    %v172 = vld [vmem:[#allocation8] sm:$0xff]
    %v173 = vld [vmem:[#allocation8 + $0x8] sm:$0xff]
    %v174 = vld [vmem:[#allocation8 + $0x10] sm:$0xff]
    %v175 = vld [vmem:[#allocation8 + $0x18] sm:$0xff]
    %v176 = vld [vmem:[#allocation8 + $0x20] sm:$0xff]
    %v177 = vld [vmem:[#allocation8 + $0x28] sm:$0xff]
    %v178 = vld [vmem:[#allocation8 + $0x30] sm:$0xff]
    %v179 = vld [vmem:[#allocation8 + $0x38] sm:$0xff]
    %v180 = vld [vmem:[#allocation8 + $0x40] sm:$0xff]
    %v181 = vld [vmem:[#allocation8 + $0x48] sm:$0xff]
    %v182 = vld [vmem:[#allocation8 + $0x50] sm:$0xff]
    %v183 = vld [vmem:[#allocation8 + $0x58] sm:$0xff]
    %v184 = vld [vmem:[#allocation8 + $0x60] sm:$0xff]
    %v185 = vld [vmem:[#allocation8 + $0x68] sm:$0xff]
    %v186 = vld [vmem:[#allocation8 + $0x70] sm:$0xff]
    %v187 = vld [vmem:[#allocation8 + $0x78] sm:$0xff]
    %v188 = vld [vmem:[#allocation8 + $0x80] sm:$0xff]
    %v189 = vld [vmem:[#allocation8 + $0x88] sm:$0xff]
    %v190 = vld [vmem:[#allocation8 + $0x90] sm:$0xff]
    %v191 = vld [vmem:[#allocation8 + $0x98] sm:$0xff]
    %v192 = vld [vmem:[#allocation8 + $0xa0] sm:$0xff]
    %v193 = vld [vmem:[#allocation8 + $0xa8] sm:$0xff]
    %v194 = vld [vmem:[#allocation8 + $0xb0] sm:$0xff]
    %v195 = vld [vmem:[#allocation8 + $0xb8] sm:$0xff]
    %v196 = vld [vmem:[#allocation8 + $0xc0] sm:$0xff]
    %v197 = vld [vmem:[#allocation8 + $0xc8] sm:$0xff]
    %v198 = vld [vmem:[#allocation8 + $0xd0] sm:$0xff]
    %v199 = vld [vmem:[#allocation8 + $0xd8] sm:$0xff]
    %v200 = vld [vmem:[#allocation8 + $0xe0] sm:$0xff]
    %v201 = vld [vmem:[#allocation8 + $0xe8] sm:$0xff]
    %v202 = vld [vmem:[#allocation8 + $0xf0] sm:$0xff]
    %v203 = vld [vmem:[#allocation8 + $0xf8] sm:$0xff]
    %v204 = vld [vmem:[#allocation8 + $0x100] sm:$0xff]
    %v205 = vld [vmem:[#allocation8 + $0x108] sm:$0xff]
    %v206 = vld [vmem:[#allocation8 + $0x110] sm:$0xff]
    %v207 = vld [vmem:[#allocation8 + $0x118] sm:$0xff]
    %v208 = vld [vmem:[#allocation8 + $0x120] sm:$0xff]
    %v209 = vld [vmem:[#allocation8 + $0x128] sm:$0xff]
    %v210 = vld [vmem:[#allocation8 + $0x130] sm:$0xff]
    %v211 = vld [vmem:[#allocation8 + $0x138] sm:$0xff]
    %v212 = vld [vmem:[#allocation8 + $0x140] sm:$0xff]
    %v213 = vld [vmem:[#allocation8 + $0x148] sm:$0xff]
    %v214 = vld [vmem:[#allocation8 + $0x150] sm:$0xff]
    %v215 = vld [vmem:[#allocation8 + $0x158] sm:$0xff]
    %v216 = vld [vmem:[#allocation8 + $0x160] sm:$0xff]
    %v217 = vld [vmem:[#allocation8 + $0x168] sm:$0xff]
    %v218 = vld [vmem:[#allocation8 + $0x170] sm:$0xff]
    %v219 = vld [vmem:[#allocation8 + $0x178] sm:$0xff]
    %v220 = vld [vmem:[#allocation8 + $0x180] sm:$0xff]
    %v221 = vld [vmem:[#allocation8 + $0x188] sm:$0xff]
    %v222 = vld [vmem:[#allocation8 + $0x190] sm:$0xff]
    %v223 = vld [vmem:[#allocation8 + $0x198] sm:$0xff]
    %v224 = vld [vmem:[#allocation8 + $0x1a0] sm:$0xff]
    %v225 = vld [vmem:[#allocation8 + $0x1a8] sm:$0xff]
    %v226 = vld [vmem:[#allocation8 + $0x1b0] sm:$0xff]
    %v227 = vld [vmem:[#allocation8 + $0x1b8] sm:$0xff]
    %v228 = vld [vmem:[#allocation8 + $0x1c0] sm:$0xff]
    %v229 = vld [vmem:[#allocation8 + $0x1c8] sm:$0xff]
    %v230 = vld [vmem:[#allocation8 + $0x1d0] sm:$0xff]
    %v231 = vld [vmem:[#allocation8 + $0x1d8] sm:$0xff]
    %v232 = vld [vmem:[#allocation8 + $0x1e0] sm:$0xff]
    %v233 = vld [vmem:[#allocation8 + $0x1e8] sm:$0xff]
    %v234 = vld [vmem:[#allocation8 + $0x1f0] sm:$0xff]
    %v235 = vld [vmem:[#allocation8 + $0x1f8] sm:$0xff]
    %v236 = vld [vmem:[#allocation8 + $0x200] sm:$0xff]
    %v237 = vld [vmem:[#allocation8 + $0x208] sm:$0xff]
    %v238 = vld [vmem:[#allocation8 + $0x210] sm:$0xff]
    %v239 = vld [vmem:[#allocation8 + $0x218] sm:$0xff]
    %v240 = vld [vmem:[#allocation8 + $0x220] sm:$0xff]
    %v241 = vld [vmem:[#allocation8 + $0x228] sm:$0xff]
    %v242 = vld [vmem:[#allocation8 + $0x230] sm:$0xff]
    %v243 = vld [vmem:[#allocation8 + $0x238] sm:$0xff]
    %v244 = vld [vmem:[#allocation8 + $0x240] sm:$0xff]
    %v245 = vld [vmem:[#allocation8 + $0x248] sm:$0xff]
    %v246 = vld [vmem:[#allocation8 + $0x250] sm:$0xff]
    %v247 = vld [vmem:[#allocation8 + $0x258] sm:$0xff]
    %v248 = vld [vmem:[#allocation8 + $0x260] sm:$0xff]
    %v249 = vld [vmem:[#allocation8 + $0x268] sm:$0xff]
    %v250 = vld [vmem:[#allocation8 + $0x270] sm:$0xff]
    %v251 = vld [vmem:[#allocation8 + $0x278] sm:$0xff]
    %v252 = vld [vmem:[#allocation8 + $0x280] sm:$0xff]
    %v253 = vld [vmem:[#allocation8 + $0x288] sm:$0xff]
    %v254 = vld [vmem:[#allocation8 + $0x290] sm:$0xff]
    %v255 = vld [vmem:[#allocation8 + $0x298] sm:$0xff]
    %v256 = vld [vmem:[#allocation8 + $0x2a0] sm:$0xff]
    %v257 = vld [vmem:[#allocation8 + $0x2a8] sm:$0xff]
    %v258 = vld [vmem:[#allocation8 + $0x2b0] sm:$0xff]
    %v259 = vld [vmem:[#allocation8 + $0x2b8] sm:$0xff]
    %v260 = vld [vmem:[#allocation8 + $0x2c0] sm:$0xff]
    %v261 = vld [vmem:[#allocation8 + $0x2c8] sm:$0xff]
    %v262 = vld [vmem:[#allocation8 + $0x2d0] sm:$0xff]
    %v263 = vld [vmem:[#allocation8 + $0x2d8] sm:$0xff]
    %v264 = vld [vmem:[#allocation8 + $0x2e0] sm:$0xff]
    %v265 = vld [vmem:[#allocation8 + $0x2e8] sm:$0xff]
    %v266 = vld [vmem:[#allocation8 + $0x2f0] sm:$0xff]
    %v267 = vld [vmem:[#allocation8 + $0x2f8] sm:$0xff]
    %v268 = vld [vmem:[#allocation10] sm:$0x3]
    %v270 = vperm.slane %v268, 0
    %v271 = vperm.slane %v268, 1
    %274 = vmatpush.msra.mxu0 %v202
    %275 = vmatpush.msra.mxu0 %v200
    %276 = vmatpush.msra.mxu0 %v198
    %277 = vmatpush.msra.mxu0 %v196
    %278 = vmatpush.msra.mxu0 %v194
    %279 = vmatpush.msra.mxu0 %v192
    %280 = vmatpush.msra.mxu0 %v190
    %281 = vmatpush.msra.mxu0 %v188
    %282 = vmatpush.msra.mxu0 %v186
    %283 = vmatpush.msra.mxu0 %v184
    %284 = vmatpush.msra.mxu0 %v182
    %285 = vmatpush.msra.mxu0 %v180
    %286 = vmatpush.msra.mxu0 %v178
    %287 = vmatpush.msra.mxu0 %v176
    %288 = vmatpush.msra.mxu0 %v174
    %289 = vmatpush.msra.mxu0 %v172
    %290 = vmatmul.f32.gmra.mxu0 %v166
    %v291 = vpop.f32.mrf.mxu0
    %v292 = vadd.f32 %v270, %v291
    %293 = vmatmul.f32.gmra.mxu0 %v169
    %v294 = vpop.f32.mrf.mxu0
    %v295 = vadd.f32 %v270, %v294
    %296 = vdwg.mxu0
    %297 = vmatpush.msra.mxu0 %v234
    %298 = vmatpush.msra.mxu0 %v232
    %299 = vmatpush.msra.mxu0 %v230
    %300 = vmatpush.msra.mxu0 %v228
    %301 = vmatpush.msra.mxu0 %v226
    %302 = vmatpush.msra.mxu0 %v224
    %303 = vmatpush.msra.mxu0 %v222
    %304 = vmatpush.msra.mxu0 %v220
    %305 = vmatpush.msra.mxu0 %v218
    %306 = vmatpush.msra.mxu0 %v216
    %307 = vmatpush.msra.mxu0 %v214
    %308 = vmatpush.msra.mxu0 %v212
    %309 = vmatpush.msra.mxu0 %v210
    %310 = vmatpush.msra.mxu0 %v208
    %311 = vmatpush.msra.mxu0 %v206
    %312 = vmatpush.msra.mxu0 %v204
    %313 = vmatmul.f32.gmra.mxu0 %v167
    %v314 = vpop.f32.mrf.mxu0
    %v315 = vadd.f32 %v292, %v314
    %316 = vmatmul.f32.gmra.mxu0 %v170
    %v317 = vpop.f32.mrf.mxu0
    %v318 = vadd.f32 %v295, %v317
    %319 = vdwg.mxu0
    %320 = vmatpush.msra.mxu0 %v266
    %321 = vmatpush.msra.mxu0 %v264
    %322 = vmatpush.msra.mxu0 %v262
    %323 = vmatpush.msra.mxu0 %v260
    %324 = vmatpush.msra.mxu0 %v258
    %325 = vmatpush.msra.mxu0 %v256
    %326 = vmatpush.msra.mxu0 %v254
    %327 = vmatpush.msra.mxu0 %v252
    %328 = vmatpush.msra.mxu0 %v250
    %329 = vmatpush.msra.mxu0 %v248
    %330 = vmatpush.msra.mxu0 %v246
    %331 = vmatpush.msra.mxu0 %v244
    %332 = vmatpush.msra.mxu0 %v242
    %333 = vmatpush.msra.mxu0 %v240
    %334 = vmatpush.msra.mxu0 %v238
    %335 = vmatpush.msra.mxu0 %v236
    %336 = vmatmul.f32.gmra.mxu0 %v168
    %v337 = vpop.f32.mrf.mxu0
    %v338 = vadd.f32 %v315, %v337
    %339 = vmatmul.f32.gmra.mxu0 %v171
    %v340 = vpop.f32.mrf.mxu0
    %v341 = vadd.f32 %v318, %v340
    %342 = vdwg.mxu0
    %343 = vmatpush.msra.mxu0 %v203
    %344 = vmatpush.msra.mxu0 %v201
    %345 = vmatpush.msra.mxu0 %v199
    %346 = vmatpush.msra.mxu0 %v197
    %347 = vmatpush.msra.mxu0 %v195
    %348 = vmatpush.msra.mxu0 %v193
    %349 = vmatpush.msra.mxu0 %v191
    %350 = vmatpush.msra.mxu0 %v189
    %351 = vmatpush.msra.mxu0 %v187
    %352 = vmatpush.msra.mxu0 %v185
    %353 = vmatpush.msra.mxu0 %v183
    %354 = vmatpush.msra.mxu0 %v181
    %355 = vmatpush.msra.mxu0 %v179
    %356 = vmatpush.msra.mxu0 %v177
    %357 = vmatpush.msra.mxu0 %v175
    %358 = vmatpush.msra.mxu0 %v173
    %359 = vmatmul.f32.gmra.mxu0 %v166
    %v360 = vpop.f32.mrf.mxu0
    %v361 = vadd.f32 %v271, %v360
    %362 = vmatmul.f32.gmra.mxu0 %v169
    %v363 = vpop.f32.mrf.mxu0
    %v364 = vadd.f32 %v271, %v363
    %365 = vdwg.mxu0
    %366 = vmatpush.msra.mxu0 %v235
    %367 = vmatpush.msra.mxu0 %v233
    %368 = vmatpush.msra.mxu0 %v231
    %369 = vmatpush.msra.mxu0 %v229
    %370 = vmatpush.msra.mxu0 %v227
    %371 = vmatpush.msra.mxu0 %v225
    %372 = vmatpush.msra.mxu0 %v223
    %373 = vmatpush.msra.mxu0 %v221
    %374 = vmatpush.msra.mxu0 %v219
    %375 = vmatpush.msra.mxu0 %v217
    %376 = vmatpush.msra.mxu0 %v215
    %377 = vmatpush.msra.mxu0 %v213
    %378 = vmatpush.msra.mxu0 %v211
    %379 = vmatpush.msra.mxu0 %v209
    %380 = vmatpush.msra.mxu0 %v207
    %381 = vmatpush.msra.mxu0 %v205
    %382 = vmatmul.f32.gmra.mxu0 %v167
    %v383 = vpop.f32.mrf.mxu0
    %v384 = vadd.f32 %v361, %v383
    %385 = vmatmul.f32.gmra.mxu0 %v170
    %v386 = vpop.f32.mrf.mxu0
    %v387 = vadd.f32 %v364, %v386
    %388 = vdwg.mxu0
    %389 = vmatpush.msra.mxu0 %v267
    %390 = vmatpush.msra.mxu0 %v265
    %391 = vmatpush.msra.mxu0 %v263
    %392 = vmatpush.msra.mxu0 %v261
    %393 = vmatpush.msra.mxu0 %v259
    %394 = vmatpush.msra.mxu0 %v257
    %395 = vmatpush.msra.mxu0 %v255
    %396 = vmatpush.msra.mxu0 %v253
    %397 = vmatpush.msra.mxu0 %v251
    %398 = vmatpush.msra.mxu0 %v249
    %399 = vmatpush.msra.mxu0 %v247
    %400 = vmatpush.msra.mxu0 %v245
    %401 = vmatpush.msra.mxu0 %v243
    %402 = vmatpush.msra.mxu0 %v241
    %403 = vmatpush.msra.mxu0 %v239
    %404 = vmatpush.msra.mxu0 %v237
    %405 = vmatmul.f32.gmra.mxu0 %v168
    %v406 = vpop.f32.mrf.mxu0
    %v407 = vadd.f32 %v384, %v406
    %408 = vmatmul.f32.gmra.mxu0 %v171
    %v409 = vpop.f32.mrf.mxu0
    %v410 = vadd.f32 %v387, %v409
    %411 = vdwg.mxu0
    %v412 = vmax.f32 %v338, 0.0
    %v413 = vmax.f32 %v341, 0.0
    %414 = vst [vmem:[#allocation2 + $0x8] sm:$0xff] %v407
    %415 = vst [vmem:[#allocation2 + $0x18] sm:$0xff] %v410
    %416 = vst [vmem:[#allocation3 + $0x8] sm:$0xff] %v412
    %417 = vst [vmem:[#allocation3 + $0x18] sm:$0xff] %v413
    %v418 = vld [vmem:[#allocation3 + $0x6] sm:$0xff]
    %v419 = vld [vmem:[#allocation3 + $0x16] sm:$0xff]
    %420 = vst [vmem:[#allocation4] sm:$0xff] %v418
    %421 = vst [vmem:[#allocation4 + $0x18] sm:$0xff] %v419
    %v422 = vld [vmem:[#allocation3 + $0x7] sm:$0xff]
    %v423 = vld [vmem:[#allocation3 + $0x17] sm:$0xff]
    %424 = vst [vmem:[#allocation4 + $0x8] sm:$0xff] %v422
    %425 = vst [vmem:[#allocation4 + $0x20] sm:$0xff] %v423
    %v426 = vld [vmem:[#allocation3 + $0x8] sm:$0xff]
    %v427 = vld [vmem:[#allocation3 + $0x18] sm:$0xff]
    %428 = vst [vmem:[#allocation4 + $0x10] sm:$0xff] %v426
    %429 = vst [vmem:[#allocation4 + $0x28] sm:$0xff] %v427
    %v430 = vld [vmem:[#allocation4] sm:$0xff]
    %v431 = vld [vmem:[#allocation4 + $0x8] sm:$0xff]
    %v432 = vld [vmem:[#allocation4 + $0x10] sm:$0xff]
    %v433 = vld [vmem:[#allocation4 + $0x18] sm:$0xff]
    %v434 = vld [vmem:[#allocation4 + $0x20] sm:$0xff]
    %v435 = vld [vmem:[#allocation4 + $0x28] sm:$0xff]
    %v436 = vld [vmem:[#allocation11] sm:$0xff]
    %v437 = vld [vmem:[#allocation11 + $0x8] sm:$0xff]
    %v438 = vld [vmem:[#allocation11 + $0x10] sm:$0xff]
    %v439 = vld [vmem:[#allocation11 + $0x18] sm:$0xff]
    %v440 = vld [vmem:[#allocation11 + $0x20] sm:$0xff]
    %v441 = vld [vmem:[#allocation11 + $0x28] sm:$0xff]
    %v442 = vld [vmem:[#allocation11 + $0x30] sm:$0xff]
    %v443 = vld [vmem:[#allocation11 + $0x38] sm:$0xff]
    %v444 = vld [vmem:[#allocation11 + $0x40] sm:$0xff]
    %v445 = vld [vmem:[#allocation11 + $0x48] sm:$0xff]
    %v446 = vld [vmem:[#allocation11 + $0x50] sm:$0xff]
    %v447 = vld [vmem:[#allocation11 + $0x58] sm:$0xff]
    %v448 = vld [vmem:[#allocation11 + $0x60] sm:$0xff]
    %v449 = vld [vmem:[#allocation11 + $0x68] sm:$0xff]
    %v450 = vld [vmem:[#allocation11 + $0x70] sm:$0xff]
    %v451 = vld [vmem:[#allocation11 + $0x78] sm:$0xff]
    %v452 = vld [vmem:[#allocation11 + $0x80] sm:$0xff]
    %v453 = vld [vmem:[#allocation11 + $0x88] sm:$0xff]
    %v454 = vld [vmem:[#allocation11 + $0x90] sm:$0xff]
    %v455 = vld [vmem:[#allocation11 + $0x98] sm:$0xff]
    %v456 = vld [vmem:[#allocation11 + $0xa0] sm:$0xff]
    %v457 = vld [vmem:[#allocation11 + $0xa8] sm:$0xff]
    %v458 = vld [vmem:[#allocation11 + $0xb0] sm:$0xff]
    %v459 = vld [vmem:[#allocation11 + $0xb8] sm:$0xff]
    %v460 = vld [vmem:[#allocation11 + $0xc0] sm:$0xff]
    %v461 = vld [vmem:[#allocation11 + $0xc8] sm:$0xff]
    %v462 = vld [vmem:[#allocation11 + $0xd0] sm:$0xff]
    %v463 = vld [vmem:[#allocation11 + $0xd8] sm:$0xff]
    %v464 = vld [vmem:[#allocation11 + $0xe0] sm:$0xff]
    %v465 = vld [vmem:[#allocation11 + $0xe8] sm:$0xff]
    %v466 = vld [vmem:[#allocation11 + $0xf0] sm:$0xff]
    %v467 = vld [vmem:[#allocation11 + $0xf8] sm:$0xff]
    %v468 = vld [vmem:[#allocation11 + $0x100] sm:$0xff]
    %v469 = vld [vmem:[#allocation11 + $0x108] sm:$0xff]
    %v470 = vld [vmem:[#allocation11 + $0x110] sm:$0xff]
    %v471 = vld [vmem:[#allocation11 + $0x118] sm:$0xff]
    %v472 = vld [vmem:[#allocation11 + $0x120] sm:$0xff]
    %v473 = vld [vmem:[#allocation11 + $0x128] sm:$0xff]
    %v474 = vld [vmem:[#allocation11 + $0x130] sm:$0xff]
    %v475 = vld [vmem:[#allocation11 + $0x138] sm:$0xff]
    %v476 = vld [vmem:[#allocation11 + $0x140] sm:$0xff]
    %v477 = vld [vmem:[#allocation11 + $0x148] sm:$0xff]
    %v478 = vld [vmem:[#allocation11 + $0x150] sm:$0xff]
    %v479 = vld [vmem:[#allocation11 + $0x158] sm:$0xff]
    %v480 = vld [vmem:[#allocation11 + $0x160] sm:$0xff]
    %v481 = vld [vmem:[#allocation11 + $0x168] sm:$0xff]
    %v482 = vld [vmem:[#allocation11 + $0x170] sm:$0xff]
    %v483 = vld [vmem:[#allocation11 + $0x178] sm:$0xff]
    %v484 = vld [vmem:[%s4] sm:$0x1]
    %v486 = vperm.slane %v484, 0
    %488 = vmatpush.msra.mxu0 %v451
    %489 = vmatpush.msra.mxu0 %v450
    %490 = vmatpush.msra.mxu0 %v449
    %491 = vmatpush.msra.mxu0 %v448
    %492 = vmatpush.msra.mxu0 %v447
    %493 = vmatpush.msra.mxu0 %v446
    %494 = vmatpush.msra.mxu0 %v445
    %495 = vmatpush.msra.mxu0 %v444
    %496 = vmatpush.msra.mxu0 %v443
    %497 = vmatpush.msra.mxu0 %v442
    %498 = vmatpush.msra.mxu0 %v441
    %499 = vmatpush.msra.mxu0 %v440
    %500 = vmatpush.msra.mxu0 %v439
    %501 = vmatpush.msra.mxu0 %v438
    %502 = vmatpush.msra.mxu0 %v437
    %503 = vmatpush.msra.mxu0 %v436
    %504 = vmatmul.f32.gmra.mxu0 %v430
    %v505 = vpop.f32.mrf.mxu0
    %v506 = vadd.f32 %v486, %v505
    %507 = vmatmul.f32.gmra.mxu0 %v433
    %v508 = vpop.f32.mrf.mxu0
    %v509 = vadd.f32 %v486, %v508
    %510 = vdwg.mxu0
    %511 = vmatpush.msra.mxu0 %v467
    %512 = vmatpush.msra.mxu0 %v466
    %513 = vmatpush.msra.mxu0 %v465
    %514 = vmatpush.msra.mxu0 %v464
    %515 = vmatpush.msra.mxu0 %v463
    %516 = vmatpush.msra.mxu0 %v462
    %517 = vmatpush.msra.mxu0 %v461
    %518 = vmatpush.msra.mxu0 %v460
    %519 = vmatpush.msra.mxu0 %v459
    %520 = vmatpush.msra.mxu0 %v458
    %521 = vmatpush.msra.mxu0 %v457
    %522 = vmatpush.msra.mxu0 %v456
    %523 = vmatpush.msra.mxu0 %v455
    %524 = vmatpush.msra.mxu0 %v454
    %525 = vmatpush.msra.mxu0 %v453
    %526 = vmatpush.msra.mxu0 %v452
    %527 = vmatmul.f32.gmra.mxu0 %v431
    %v528 = vpop.f32.mrf.mxu0
    %v529 = vadd.f32 %v506, %v528
    %530 = vmatmul.f32.gmra.mxu0 %v434
    %v531 = vpop.f32.mrf.mxu0
    %v532 = vadd.f32 %v509, %v531
    %533 = vdwg.mxu0
    %534 = vmatpush.msra.mxu0 %v483
    %535 = vmatpush.msra.mxu0 %v482
    %536 = vmatpush.msra.mxu0 %v481
    %537 = vmatpush.msra.mxu0 %v480
    %538 = vmatpush.msra.mxu0 %v479
    %539 = vmatpush.msra.mxu0 %v478
    %540 = vmatpush.msra.mxu0 %v477
    %541 = vmatpush.msra.mxu0 %v476
    %542 = vmatpush.msra.mxu0 %v475
    %543 = vmatpush.msra.mxu0 %v474
    %544 = vmatpush.msra.mxu0 %v473
    %545 = vmatpush.msra.mxu0 %v472
    %546 = vmatpush.msra.mxu0 %v471
    %547 = vmatpush.msra.mxu0 %v470
    %548 = vmatpush.msra.mxu0 %v469
    %549 = vmatpush.msra.mxu0 %v468
    %550 = vmatmul.f32.gmra.mxu0 %v432
    %v551 = vpop.f32.mrf.mxu0
    %v552 = vadd.f32 %v529, %v551
    %553 = vmatmul.f32.gmra.mxu0 %v435
    %v554 = vpop.f32.mrf.mxu0
    %v555 = vadd.f32 %v532, %v554
    %556 = vdwg.mxu0
    %v557 = vmax.f32 %v552, 0.0
    %v558 = vmax.f32 %v555, 0.0
    %v559 = vld [vmem:[#allocation2 + $0x8] sm:$0xff]
    %v560 = vld [vmem:[#allocation2 + $0x18] sm:$0xff]
    %v561 = vadd.f32 %v557, %v559
    %v562 = vadd.f32 %v558, %v560
    %563 = vst [vmem:[#allocation2 + $0x8] sm:$0xff] %v561
    %564 = vst [vmem:[#allocation2 + $0x18] sm:$0xff] %v562
    %v565 = vld [vmem:[#allocation2 + $0x4] sm:$0xff]
    %v566 = vld [vmem:[#allocation2 + $0x14] sm:$0xff]
    %567 = vst [vmem:[#allocation4] sm:$0xff] %v565
    %568 = vst [vmem:[#allocation4 + $0x18] sm:$0xff] %v566
    %v569 = vld [vmem:[#allocation2 + $0x6] sm:$0xff]
    %v570 = vld [vmem:[#allocation2 + $0x16] sm:$0xff]
    %571 = vst [vmem:[#allocation4 + $0x8] sm:$0xff] %v569
    %572 = vst [vmem:[#allocation4 + $0x20] sm:$0xff] %v570
    %v573 = vld [vmem:[#allocation2 + $0x8] sm:$0xff]
    %v574 = vld [vmem:[#allocation2 + $0x18] sm:$0xff]
    %575 = vst [vmem:[#allocation4 + $0x10] sm:$0xff] %v573
    %576 = vst [vmem:[#allocation4 + $0x28] sm:$0xff] %v574
    %v577 = vld [vmem:[#allocation4] sm:$0xff]
    %v578 = vld [vmem:[#allocation4 + $0x8] sm:$0xff]
    %v579 = vld [vmem:[#allocation4 + $0x10] sm:$0xff]
    %v580 = vld [vmem:[#allocation4 + $0x18] sm:$0xff]
    %v581 = vld [vmem:[#allocation4 + $0x20] sm:$0xff]
    %v582 = vld [vmem:[#allocation4 + $0x28] sm:$0xff]
    %v583 = vld [vmem:[#allocation13] sm:$0xff]
    %v584 = vld [vmem:[#allocation13 + $0x8] sm:$0xff]
    %v585 = vld [vmem:[#allocation13 + $0x10] sm:$0xff]
    %v586 = vld [vmem:[#allocation13 + $0x18] sm:$0xff]
    %v587 = vld [vmem:[#allocation13 + $0x20] sm:$0xff]
    %v588 = vld [vmem:[#allocation13 + $0x28] sm:$0xff]
    %v589 = vld [vmem:[#allocation13 + $0x30] sm:$0xff]
    %v590 = vld [vmem:[#allocation13 + $0x38] sm:$0xff]
    %v591 = vld [vmem:[#allocation13 + $0x40] sm:$0xff]
    %v592 = vld [vmem:[#allocation13 + $0x48] sm:$0xff]
    %v593 = vld [vmem:[#allocation13 + $0x50] sm:$0xff]
    %v594 = vld [vmem:[#allocation13 + $0x58] sm:$0xff]
    %v595 = vld [vmem:[#allocation13 + $0x60] sm:$0xff]
    %v596 = vld [vmem:[#allocation13 + $0x68] sm:$0xff]
    %v597 = vld [vmem:[#allocation13 + $0x70] sm:$0xff]
    %v598 = vld [vmem:[#allocation13 + $0x78] sm:$0xff]
    %v599 = vld [vmem:[#allocation13 + $0x80] sm:$0xff]
    %v600 = vld [vmem:[#allocation13 + $0x88] sm:$0xff]
    %v601 = vld [vmem:[#allocation13 + $0x90] sm:$0xff]
    %v602 = vld [vmem:[#allocation13 + $0x98] sm:$0xff]
    %v603 = vld [vmem:[#allocation13 + $0xa0] sm:$0xff]
    %v604 = vld [vmem:[#allocation13 + $0xa8] sm:$0xff]
    %v605 = vld [vmem:[#allocation13 + $0xb0] sm:$0xff]
    %v606 = vld [vmem:[#allocation13 + $0xb8] sm:$0xff]
    %v607 = vld [vmem:[#allocation13 + $0xc0] sm:$0xff]
    %v608 = vld [vmem:[#allocation13 + $0xc8] sm:$0xff]
    %v609 = vld [vmem:[#allocation13 + $0xd0] sm:$0xff]
    %v610 = vld [vmem:[#allocation13 + $0xd8] sm:$0xff]
    %v611 = vld [vmem:[#allocation13 + $0xe0] sm:$0xff]
    %v612 = vld [vmem:[#allocation13 + $0xe8] sm:$0xff]
    %v613 = vld [vmem:[#allocation13 + $0xf0] sm:$0xff]
    %v614 = vld [vmem:[#allocation13 + $0xf8] sm:$0xff]
    %v615 = vld [vmem:[#allocation13 + $0x100] sm:$0xff]
    %v616 = vld [vmem:[#allocation13 + $0x108] sm:$0xff]
    %v617 = vld [vmem:[#allocation13 + $0x110] sm:$0xff]
    %v618 = vld [vmem:[#allocation13 + $0x118] sm:$0xff]
    %v619 = vld [vmem:[#allocation13 + $0x120] sm:$0xff]
    %v620 = vld [vmem:[#allocation13 + $0x128] sm:$0xff]
    %v621 = vld [vmem:[#allocation13 + $0x130] sm:$0xff]
    %v622 = vld [vmem:[#allocation13 + $0x138] sm:$0xff]
    %v623 = vld [vmem:[#allocation13 + $0x140] sm:$0xff]
    %v624 = vld [vmem:[#allocation13 + $0x148] sm:$0xff]
    %v625 = vld [vmem:[#allocation13 + $0x150] sm:$0xff]
    %v626 = vld [vmem:[#allocation13 + $0x158] sm:$0xff]
    %v627 = vld [vmem:[#allocation13 + $0x160] sm:$0xff]
    %v628 = vld [vmem:[#allocation13 + $0x168] sm:$0xff]
    %v629 = vld [vmem:[#allocation13 + $0x170] sm:$0xff]
    %v630 = vld [vmem:[#allocation13 + $0x178] sm:$0xff]
    %v631 = vld [vmem:[%s6] sm:$0x1]
    %v633 = vperm.slane %v631, 0
    %635 = vmatpush.msra.mxu0 %v598
    %636 = vmatpush.msra.mxu0 %v597
    %637 = vmatpush.msra.mxu0 %v596
    %638 = vmatpush.msra.mxu0 %v595
    %639 = vmatpush.msra.mxu0 %v594
    %640 = vmatpush.msra.mxu0 %v593
    %641 = vmatpush.msra.mxu0 %v592
    %642 = vmatpush.msra.mxu0 %v591
    %643 = vmatpush.msra.mxu0 %v590
    %644 = vmatpush.msra.mxu0 %v589
    %645 = vmatpush.msra.mxu0 %v588
    %646 = vmatpush.msra.mxu0 %v587
    %647 = vmatpush.msra.mxu0 %v586
    %648 = vmatpush.msra.mxu0 %v585
    %649 = vmatpush.msra.mxu0 %v584
    %650 = vmatpush.msra.mxu0 %v583
    %651 = vmatmul.f32.gmra.mxu0 %v577
    %v652 = vpop.f32.mrf.mxu0
    %v653 = vadd.f32 %v633, %v652
    %654 = vmatmul.f32.gmra.mxu0 %v580
    %v655 = vpop.f32.mrf.mxu0
    %v656 = vadd.f32 %v633, %v655
    %657 = vdwg.mxu0
    %658 = vmatpush.msra.mxu0 %v614
    %659 = vmatpush.msra.mxu0 %v613
    %660 = vmatpush.msra.mxu0 %v612
    %661 = vmatpush.msra.mxu0 %v611
    %662 = vmatpush.msra.mxu0 %v610
    %663 = vmatpush.msra.mxu0 %v609
    %664 = vmatpush.msra.mxu0 %v608
    %665 = vmatpush.msra.mxu0 %v607
    %666 = vmatpush.msra.mxu0 %v606
    %667 = vmatpush.msra.mxu0 %v605
    %668 = vmatpush.msra.mxu0 %v604
    %669 = vmatpush.msra.mxu0 %v603
    %670 = vmatpush.msra.mxu0 %v602
    %671 = vmatpush.msra.mxu0 %v601
    %672 = vmatpush.msra.mxu0 %v600
    %673 = vmatpush.msra.mxu0 %v599
    %674 = vmatmul.f32.gmra.mxu0 %v578
    %v675 = vpop.f32.mrf.mxu0
    %v676 = vadd.f32 %v653, %v675
    %677 = vmatmul.f32.gmra.mxu0 %v581
    %v678 = vpop.f32.mrf.mxu0
    %v679 = vadd.f32 %v656, %v678
    %680 = vdwg.mxu0
    %681 = vmatpush.msra.mxu0 %v630
    %682 = vmatpush.msra.mxu0 %v629
    %683 = vmatpush.msra.mxu0 %v628
    %684 = vmatpush.msra.mxu0 %v627
    %685 = vmatpush.msra.mxu0 %v626
    %686 = vmatpush.msra.mxu0 %v625
    %687 = vmatpush.msra.mxu0 %v624
    %688 = vmatpush.msra.mxu0 %v623
    %689 = vmatpush.msra.mxu0 %v622
    %690 = vmatpush.msra.mxu0 %v621
    %691 = vmatpush.msra.mxu0 %v620
    %692 = vmatpush.msra.mxu0 %v619
    %693 = vmatpush.msra.mxu0 %v618
    %694 = vmatpush.msra.mxu0 %v617
    %695 = vmatpush.msra.mxu0 %v616
    %696 = vmatpush.msra.mxu0 %v615
    %697 = vmatmul.f32.gmra.mxu0 %v579
    %v698 = vpop.f32.mrf.mxu0
    %v699 = vadd.f32 %v676, %v698
    %700 = vmatmul.f32.gmra.mxu0 %v582
    %v701 = vpop.f32.mrf.mxu0
    %v702 = vadd.f32 %v679, %v701
    %703 = vdwg.mxu0
    %v704 = vmax.f32 %v699, 0.0
    %v705 = vmax.f32 %v702, 0.0
    %706 = vst [vmem:[#allocation3 + $0x8] sm:$0xff] %v704
    %707 = vst [vmem:[#allocation3 + $0x18] sm:$0xff] %v705
    %v708 = vld [vmem:[#allocation3 + $0x4] sm:$0xff]
    %v709 = vld [vmem:[#allocation3 + $0x14] sm:$0xff]
    %710 = vst [vmem:[#allocation4] sm:$0xff] %v708
    %711 = vst [vmem:[#allocation4 + $0x18] sm:$0xff] %v709
    %v712 = vld [vmem:[#allocation3 + $0x6] sm:$0xff]
    %v713 = vld [vmem:[#allocation3 + $0x16] sm:$0xff]
    %714 = vst [vmem:[#allocation4 + $0x8] sm:$0xff] %v712
    %715 = vst [vmem:[#allocation4 + $0x20] sm:$0xff] %v713
    %v716 = vld [vmem:[#allocation3 + $0x8] sm:$0xff]
    %v717 = vld [vmem:[#allocation3 + $0x18] sm:$0xff]
    %718 = vst [vmem:[#allocation4 + $0x10] sm:$0xff] %v716
    %719 = vst [vmem:[#allocation4 + $0x28] sm:$0xff] %v717
    %v720 = vld [vmem:[#allocation4] sm:$0xff]
    %v721 = vld [vmem:[#allocation4 + $0x8] sm:$0xff]
    %v722 = vld [vmem:[#allocation4 + $0x10] sm:$0xff]
    %v723 = vld [vmem:[#allocation4 + $0x18] sm:$0xff]
    %v724 = vld [vmem:[#allocation4 + $0x20] sm:$0xff]
    %v725 = vld [vmem:[#allocation4 + $0x28] sm:$0xff]
    %v726 = vld [vmem:[#allocation14] sm:$0xff]
    %v727 = vld [vmem:[#allocation14 + $0x8] sm:$0xff]
    %v728 = vld [vmem:[#allocation14 + $0x10] sm:$0xff]
    %v729 = vld [vmem:[#allocation14 + $0x18] sm:$0xff]
    %v730 = vld [vmem:[#allocation14 + $0x20] sm:$0xff]
    %v731 = vld [vmem:[#allocation14 + $0x28] sm:$0xff]
    %v732 = vld [vmem:[#allocation14 + $0x30] sm:$0xff]
    %v733 = vld [vmem:[#allocation14 + $0x38] sm:$0xff]
    %v734 = vld [vmem:[#allocation14 + $0x40] sm:$0xff]
    %v735 = vld [vmem:[#allocation14 + $0x48] sm:$0xff]
    %v736 = vld [vmem:[#allocation14 + $0x50] sm:$0xff]
    %v737 = vld [vmem:[#allocation14 + $0x58] sm:$0xff]
    %v738 = vld [vmem:[#allocation14 + $0x60] sm:$0xff]
    %v739 = vld [vmem:[#allocation14 + $0x68] sm:$0xff]
    %v740 = vld [vmem:[#allocation14 + $0x70] sm:$0xff]
    %v741 = vld [vmem:[#allocation14 + $0x78] sm:$0xff]
    %v742 = vld [vmem:[#allocation14 + $0x80] sm:$0xff]
    %v743 = vld [vmem:[#allocation14 + $0x88] sm:$0xff]
    %v744 = vld [vmem:[#allocation14 + $0x90] sm:$0xff]
    %v745 = vld [vmem:[#allocation14 + $0x98] sm:$0xff]
    %v746 = vld [vmem:[#allocation14 + $0xa0] sm:$0xff]
    %v747 = vld [vmem:[#allocation14 + $0xa8] sm:$0xff]
    %v748 = vld [vmem:[#allocation14 + $0xb0] sm:$0xff]
    %v749 = vld [vmem:[#allocation14 + $0xb8] sm:$0xff]
    %v750 = vld [vmem:[#allocation14 + $0xc0] sm:$0xff]
    %v751 = vld [vmem:[#allocation14 + $0xc8] sm:$0xff]
    %v752 = vld [vmem:[#allocation14 + $0xd0] sm:$0xff]
    %v753 = vld [vmem:[#allocation14 + $0xd8] sm:$0xff]
    %v754 = vld [vmem:[#allocation14 + $0xe0] sm:$0xff]
    %v755 = vld [vmem:[#allocation14 + $0xe8] sm:$0xff]
    %v756 = vld [vmem:[#allocation14 + $0xf0] sm:$0xff]
    %v757 = vld [vmem:[#allocation14 + $0xf8] sm:$0xff]
    %v758 = vld [vmem:[#allocation14 + $0x100] sm:$0xff]
    %v759 = vld [vmem:[#allocation14 + $0x108] sm:$0xff]
    %v760 = vld [vmem:[#allocation14 + $0x110] sm:$0xff]
    %v761 = vld [vmem:[#allocation14 + $0x118] sm:$0xff]
    %v762 = vld [vmem:[#allocation14 + $0x120] sm:$0xff]
    %v763 = vld [vmem:[#allocation14 + $0x128] sm:$0xff]
    %v764 = vld [vmem:[#allocation14 + $0x130] sm:$0xff]
    %v765 = vld [vmem:[#allocation14 + $0x138] sm:$0xff]
    %v766 = vld [vmem:[#allocation14 + $0x140] sm:$0xff]
    %v767 = vld [vmem:[#allocation14 + $0x148] sm:$0xff]
    %v768 = vld [vmem:[#allocation14 + $0x150] sm:$0xff]
    %v769 = vld [vmem:[#allocation14 + $0x158] sm:$0xff]
    %v770 = vld [vmem:[#allocation14 + $0x160] sm:$0xff]
    %v771 = vld [vmem:[#allocation14 + $0x168] sm:$0xff]
    %v772 = vld [vmem:[#allocation14 + $0x170] sm:$0xff]
    %v773 = vld [vmem:[#allocation14 + $0x178] sm:$0xff]
    %v774 = vld [vmem:[%s8] sm:$0x1]
    %v776 = vperm.slane %v774, 0
    %778 = vmatpush.msra.mxu0 %v741
    %779 = vmatpush.msra.mxu0 %v740
    %780 = vmatpush.msra.mxu0 %v739
    %781 = vmatpush.msra.mxu0 %v738
    %782 = vmatpush.msra.mxu0 %v737
    %783 = vmatpush.msra.mxu0 %v736
    %784 = vmatpush.msra.mxu0 %v735
    %785 = vmatpush.msra.mxu0 %v734
    %786 = vmatpush.msra.mxu0 %v733
    %787 = vmatpush.msra.mxu0 %v732
    %788 = vmatpush.msra.mxu0 %v731
    %789 = vmatpush.msra.mxu0 %v730
    %790 = vmatpush.msra.mxu0 %v729
    %791 = vmatpush.msra.mxu0 %v728
    %792 = vmatpush.msra.mxu0 %v727
    %793 = vmatpush.msra.mxu0 %v726
    %794 = vmatmul.f32.gmra.mxu0 %v720
    %v795 = vpop.f32.mrf.mxu0
    %v796 = vadd.f32 %v776, %v795
    %797 = vmatmul.f32.gmra.mxu0 %v723
    %v798 = vpop.f32.mrf.mxu0
    %v799 = vadd.f32 %v776, %v798
    %800 = vdwg.mxu0
    %801 = vmatpush.msra.mxu0 %v757
    %802 = vmatpush.msra.mxu0 %v756
    %803 = vmatpush.msra.mxu0 %v755
    %804 = vmatpush.msra.mxu0 %v754
    %805 = vmatpush.msra.mxu0 %v753
    %806 = vmatpush.msra.mxu0 %v752
    %807 = vmatpush.msra.mxu0 %v751
    %808 = vmatpush.msra.mxu0 %v750
    %809 = vmatpush.msra.mxu0 %v749
    %810 = vmatpush.msra.mxu0 %v748
    %811 = vmatpush.msra.mxu0 %v747
    %812 = vmatpush.msra.mxu0 %v746
    %813 = vmatpush.msra.mxu0 %v745
    %814 = vmatpush.msra.mxu0 %v744
    %815 = vmatpush.msra.mxu0 %v743
    %816 = vmatpush.msra.mxu0 %v742
    %817 = vmatmul.f32.gmra.mxu0 %v721
    %v818 = vpop.f32.mrf.mxu0
    %v819 = vadd.f32 %v796, %v818
    %820 = vmatmul.f32.gmra.mxu0 %v724
    %v821 = vpop.f32.mrf.mxu0
    %v822 = vadd.f32 %v799, %v821
    %823 = vdwg.mxu0
    %824 = vmatpush.msra.mxu0 %v773
    %825 = vmatpush.msra.mxu0 %v772
    %826 = vmatpush.msra.mxu0 %v771
    %827 = vmatpush.msra.mxu0 %v770
    %828 = vmatpush.msra.mxu0 %v769
    %829 = vmatpush.msra.mxu0 %v768
    %830 = vmatpush.msra.mxu0 %v767
    %831 = vmatpush.msra.mxu0 %v766
    %832 = vmatpush.msra.mxu0 %v765
    %833 = vmatpush.msra.mxu0 %v764
    %834 = vmatpush.msra.mxu0 %v763
    %835 = vmatpush.msra.mxu0 %v762
    %836 = vmatpush.msra.mxu0 %v761
    %837 = vmatpush.msra.mxu0 %v760
    %838 = vmatpush.msra.mxu0 %v759
    %839 = vmatpush.msra.mxu0 %v758
    %840 = vmatmul.f32.gmra.mxu0 %v722
    %v841 = vpop.f32.mrf.mxu0
    %v842 = vadd.f32 %v819, %v841
    %843 = vmatmul.f32.gmra.mxu0 %v725
    %v844 = vpop.f32.mrf.mxu0
    %v845 = vadd.f32 %v822, %v844
    %846 = vdwg.mxu0
    %v847 = vld [vmem:[#allocation2 + $0x8] sm:$0xff]
    %v848 = vld [vmem:[#allocation2 + $0x18] sm:$0xff]
    %v849 = vadd.f32 %v842, %v847
    %v850 = vadd.f32 %v845, %v848
    %851 = vst [vmem:[#allocation2 + $0x8] sm:$0xff] %v849
    %852 = vst [vmem:[#allocation2 + $0x18] sm:$0xff] %v850
    %v853 = vld [vmem:[#allocation2 + $0x8] sm:$0xff]
    %v854 = vld [vmem:[#allocation2 + $0x18] sm:$0xff]
    %v855 = vld [vmem:[#allocation16] sm:$0xff]
    %v856 = vld [vmem:[#allocation16 + $0x8] sm:$0xff]
    %v857 = vld [vmem:[#allocation16 + $0x10] sm:$0xff]
    %v858 = vld [vmem:[#allocation16 + $0x18] sm:$0xff]
    %v859 = vld [vmem:[#allocation16 + $0x20] sm:$0xff]
    %v860 = vld [vmem:[#allocation16 + $0x28] sm:$0xff]
    %v861 = vld [vmem:[#allocation16 + $0x30] sm:$0xff]
    %v862 = vld [vmem:[#allocation16 + $0x38] sm:$0xff]
    %v863 = vld [vmem:[#allocation16 + $0x40] sm:$0xff]
    %v864 = vld [vmem:[#allocation16 + $0x48] sm:$0xff]
    %v865 = vld [vmem:[#allocation16 + $0x50] sm:$0xff]
    %v866 = vld [vmem:[#allocation16 + $0x58] sm:$0xff]
    %v867 = vld [vmem:[#allocation16 + $0x60] sm:$0xff]
    %v868 = vld [vmem:[#allocation16 + $0x68] sm:$0xff]
    %v869 = vld [vmem:[#allocation16 + $0x70] sm:$0xff]
    %v870 = vld [vmem:[#allocation16 + $0x78] sm:$0xff]
    %v871 = vld [vmem:[%s10] sm:$0x1]
    %v873 = vperm.slane %v871, 0
    %875 = vmatpush.msra.mxu0 %v870
    %876 = vmatpush.msra.mxu0 %v869
    %877 = vmatpush.msra.mxu0 %v868
    %878 = vmatpush.msra.mxu0 %v867
    %879 = vmatpush.msra.mxu0 %v866
    %880 = vmatpush.msra.mxu0 %v865
    %881 = vmatpush.msra.mxu0 %v864
    %882 = vmatpush.msra.mxu0 %v863
    %883 = vmatpush.msra.mxu0 %v862
    %884 = vmatpush.msra.mxu0 %v861
    %885 = vmatpush.msra.mxu0 %v860
    %886 = vmatpush.msra.mxu0 %v859
    %887 = vmatpush.msra.mxu0 %v858
    %888 = vmatpush.msra.mxu0 %v857
    %889 = vmatpush.msra.mxu0 %v856
    %890 = vmatpush.msra.mxu0 %v855
    %891 = vmatmul.f32.gmra.mxu0 %v853
    %v892 = vpop.f32.mrf.mxu0
    %v893 = vadd.f32 %v873, %v892
    %894 = vmatmul.f32.gmra.mxu0 %v854
    %v895 = vpop.f32.mrf.mxu0
    %v896 = vadd.f32 %v873, %v895
    %897 = vdwg.mxu0
    %898 = vst [vmem:[#allocation17] sm:$0xff] %v893
    %899 = vst [vmem:[#allocation17 + $0x8] sm:$0xff] %v896
    // Predicated region
    $region74: #{tpu_custom_call.1} parent=1 // pred_check
      _
    $region75: #{tpu_custom_call.1} parent=1 // pred_check_branch
      %901 = sbr.rel (0) target = $region77
    $region76: #{tpu_custom_call.1} parent=1 // pred_region
      %903 = vsyncadd [#allocation7], 0
      %s904 = sshll.u32 [#allocation17], 4
      %s905 = int_to_ptr.vmem [resolvable:$true] %s904
      %s906 = sshll.u32 %s11, 4
      %s907 = int_to_ptr.hbm [resolvable:$true] %s906
      %912 = dma.vmem_to_hbm [thread:$0]  %s905, 256, %s907, [#allocation7], 128, 128, 8
    $region77: #{tpu_custom_call.1} parent=1 // pred_fallthru
      _
    // Predicated region
    $region78: #{tpu_custom_call.1} parent=1 // pred_check
      _
    $region79: #{tpu_custom_call.1} parent=1 // pred_check_branch
      %914 = sbr.rel (0) target = $region81
    $region80: #{tpu_custom_call.1} parent=1 // pred_region
      %916 = dma.done [#allocation7], 256
    $region81: #{tpu_custom_call.1} parent=1 // pred_fallthru
      _
    %917 = vsyncpa [#allocation6], 1
    %918 = vsyncpa [#allocation9], 1
    %919 = vsyncpa [#allocation12], 1
    %920 = vsyncpa [#allocation15], 1
    %921 = vsyncpa [#allocation7], 1

</llo_original>
